<compile_context>
chip_gen: v7x
topology: tpu7x:2x2x1
jax: 0.10.0
libtpu: 0.0.40
codegen_flags: <defaults>
</compile_context>

<pallas_src>
import math

import jax
import jax.numpy as jnp
from jax.experimental import pallas as pl
from jax.experimental.pallas import tpu as pltpu


def _round_up(x, m):
    return ((x + m - 1) // m) * m


# ----------------------------------------------------------------------------
# Fused DSSM kernel: both MLP towers (docs batched) + cosine + gamma + softmax
# ----------------------------------------------------------------------------
def _make_dssm_kernel(num_layers, num_docs, out_lanes, bf16_act):
    L, N1 = num_layers, num_docs

    def kernel(*refs):
        # refs: q, docs, [w_l, b_l]*L (left), [w_r, b_r]*L (right), gw, gb, out
        q_ref, docs_ref = refs[0], refs[1]
        w_refs = refs[2:2 + 4 * L]
        gw_ref = refs[2 + 4 * L]
        gb_ref = refs[3 + 4 * L]
        o_ref = refs[4 + 4 * L]

        left = [(w_refs[2 * l], w_refs[2 * l + 1]) for l in range(L)]
        right = [(w_refs[2 * L + 2 * l], w_refs[2 * L + 2 * l + 1])
                 for l in range(L)]

        def mlp(x, layers):
            # Fused Linear+tanh chain; activations never leave VMEM/vregs.
            # Weights are already in their final dtype (pre-cast in wrapper).
            for w_ref, b_ref in layers:
                w = w_ref[...]
                y = jnp.dot(x.astype(w.dtype), w,
                            preferred_element_type=jnp.float32) + b_ref[...]
                x = jnp.tanh(y.astype(jnp.bfloat16) if bf16_act else y)
            return x.astype(jnp.float32)          # cosine/norm math stays f32

        tb = q_ref.shape[0]

        # Query tower: one pass.
        out_q = mlp(q_ref[...], left)                              # (tb, D)
        qn2 = jnp.sum(out_q * out_q, axis=-1, keepdims=True)       # (tb, 1)

        # Document tower: ONE batched pass over all N+1 docs.
        n1, _, f = docs_ref.shape                                  # (N1, tb, F)
        x_docs = docs_ref[...].reshape(n1 * tb, f)                 # free relayout
        out_d = mlp(x_docs, right)                                 # (N1*tb, D)

        gw = gw_ref[0, 0]
        gb = gb_ref[0, 0]

        lane = jax.lax.broadcasted_iota(jnp.int32, (tb, out_lanes), 1)
        # Lanes >= N1 hold a large negative so they softmax to exactly 0.
        scores = jnp.full((tb, out_lanes), -1e30, dtype=jnp.float32)

        for j in range(N1):                                        # doc 0 = positive
            out_dj = out_d[j * tb:(j + 1) * tb, :]                 # aligned slice
            dots = jnp.sum(out_q * out_dj, axis=-1, keepdims=True)
            dn2 = jnp.sum(out_dj * out_dj, axis=-1, keepdims=True)
            # cosine: single rsqrt (one EUP op per doc)
            cos = dots * jax.lax.rsqrt(jnp.maximum(qn2 * dn2, 1e-16))
            scores = jnp.where(lane == j, cos * gw + gb, scores)

        # Softmax over docs; exact divide keeps probabilities normalized.
        m = jnp.max(scores, axis=-1, keepdims=True)
        e = jnp.exp(scores - m)
        o_ref[...] = e / jnp.sum(e, axis=-1, keepdims=True)        # lane-dense store

    return kernel


# ----------------------------------------------------------------------------
# Wrappers
# ----------------------------------------------------------------------------
def dssm_forward(padded_params, q, p, ns, *, block_b=None, bf16_act=False):
    """PyTorch-signature entry: q [B,F], p [B,F], ns [B,N,F]."""
    # Build doc-major documents [N+1, B, F] once (doc 0 = positive).
    docs = jnp.concatenate([p[None, :, :], jnp.transpose(ns, (1, 0, 2))], axis=0)
    return dssm_forward_docs(padded_params, q, docs,
                             block_b=block_b, bf16_act=bf16_act)


def dssm_forward_docs(padded_params, q, docs, *, block_b=None, bf16_act=False):
    """Core entry: docs already doc-major [N+1, B, F] (skips wrapper reshuffle)."""
    B, F = q.shape
    N1 = docs.shape[0]
    left = padded_params["mlp_left"]
    right = padded_params["mlp_right"]
    L = len(left)
    out_lanes = max(128, _round_up(N1, 128))

    use_bf16 = left[0][0].dtype == jnp.bfloat16
    if bf16_act and not use_bf16:
        raise ValueError("bf16_act requires bf16 weights "
                         "(pad_dssm_params(..., weight_dtype=jnp.bfloat16))")

    # Pad batch rows only to the sublane quantum (<= 7 extra rows).
    b8 = _round_up(B, 8)
    if b8 != B:
        q = jnp.pad(q, ((0, b8 - B), (0, 0)))
        docs = jnp.pad(docs, ((0, 0), (0, b8 - B), (0, 0)))

    widths = [w.shape[1] for w, _ in left]
    weight_bytes = sum(w.size * w.dtype.itemsize + b.size * b.dtype.itemsize
                       for w, b in left + right)

    # Batch tile: aim for >=2 grid steps (v7x has 2 TensorCores), cap and
    # shrink until a conservative VMEM estimate fits a 40 MiB budget
    # (v7x VMEM is 64 MiB total).
    if block_b is not None:
        tb = max(8, _round_up(block_b, 8))
    else:
        tb = max(8, min(256, _round_up(pl.cdiv(b8, 2), 8)))
    tb = min(tb, b8)

    maxw = max(widths + [F, out_lanes])

    def vmem_est(t):
        return (2 * (t * F + N1 * t * F) * 4         # q + docs blocks (x2 buffers)
                + 2 * t * out_lanes * 4              # output block   (x2 buffers)
                + 2 * weight_bytes                   # resident weights
                + 3 * (N1 + 1) * t * maxw * 4)       # activation headroom

    budget = 40 * 1024 * 1024
    while tb > 8 and vmem_est(tb) > budget:
        tb = max(8, _round_up(tb // 2, 8))

    grid = (pl.cdiv(b8, tb),)

    weight_args, weight_specs = [], []
    for w, b in left + right:
        weight_args += [w, b]
        weight_specs += [pl.BlockSpec(w.shape, lambda i: (0, 0)),
                         pl.BlockSpec(b.shape, lambda i: (0, 0))]

    # Advisory cost hint for XLA scheduling.
    mlp_flops_row = sum(2 * w.shape[0] * w.shape[1] for w, _ in left)
    flops = int(b8 * (1 + N1) * mlp_flops_row + b8 * N1 * 6 * widths[-1])
    transcendentals = int(b8 * (1 + N1) * sum(widths) + b8 * (N1 + out_lanes))
    bytes_accessed = int(4 * (q.size + docs.size + b8 * out_lanes) + weight_bytes)
    cost = pl.CostEstimate(flops=flops, transcendentals=transcendentals,
                           bytes_accessed=bytes_accessed)

    kernel = _make_dssm_kernel(L, N1, out_lanes, bf16_act)

    out = pl.pallas_call(
        kernel,
        out_shape=jax.ShapeDtypeStruct((b8, out_lanes), jnp.float32),
        grid=grid,
        in_specs=[
            pl.BlockSpec((tb, F), lambda i: (i, 0)),            # query rows
            pl.BlockSpec((N1, tb, F), lambda i: (0, i, 0)),     # docs, doc-major
            *weight_specs,                                      # resident weights
            pl.BlockSpec(memory_space=pltpu.MemorySpace.SMEM),  # gamma weight
            pl.BlockSpec(memory_space=pltpu.MemorySpace.SMEM),  # gamma bias
        ],
        out_specs=pl.BlockSpec((tb, out_lanes), lambda i: (i, 0)),
        compiler_params=pltpu.CompilerParams(
            dimension_semantics=("parallel",),
            vmem_limit_bytes=48 * 1024 * 1024),
        cost_estimate=cost,
    )(q, docs, *weight_args,
      padded_params["gamma_w"], padded_params["gamma_b"])

    return out[:B, 0]                                      # softmax_qp, [B]


# ----------------------------------------------------------------------------
# Parameter init (mirrors nn.Linear + xavier_uniform_ on weights)
# ----------------------------------------------------------------------------
def _init_linear(key, in_f, out_f):
    kw, kb = jax.random.split(key)
    w_bound = math.sqrt(6.0 / (in_f + out_f))               # xavier_uniform_
    b_bound = 1.0 / math.sqrt(in_f)                         # default bias init
    w = jax.random.uniform(kw, (in_f, out_f), jnp.float32, -w_bound, w_bound)
    b = jax.random.uniform(kb, (out_f,), jnp.float32, -b_bound, b_bound)
    return w, b


def init_dssm_params(key, in_features, num_layers, num_units, fan_out):
    sizes = [in_features] + num_layers * [num_units] + [fan_out]
    keys = jax.random.split(key, 2 * (len(sizes) - 1) + 1)
    mlp_left, mlp_right = [], []
    ki = 0
    for a, b in zip(sizes, sizes[1:]):
        mlp_left.append(_init_linear(keys[ki], a, b)); ki += 1
    for a, b in zip(sizes, sizes[1:]):
        mlp_right.append(_init_linear(keys[ki], a, b)); ki += 1
    gw, gb = _init_linear(keys[ki], 1, 1)
    return {
        "mlp_left": mlp_left,
        "mlp_right": mlp_right,
        "gamma_w": gw.reshape(1, 1),
        "gamma_b": gb.reshape(1, 1),
    }


def pad_dssm_params(params, lane=128, weight_dtype=jnp.float32):
    """Zero-pad hidden/fan-out dims to 128 lanes and (optionally) pre-cast the
    matmul weights to bf16 — both done once here, never per-step in the kernel.

    tanh(0 + 0) == 0, so padded activation lanes stay exactly zero through
    every layer and contribute nothing to the cosine norms."""
    def pad_stack(layers):
        padded, prev_out = [], None
        for w, b in layers:
            in_f, out_f = w.shape
            in_pad = in_f if prev_out is None else prev_out
            out_pad = _round_up(out_f, lane)
            wp = jnp.zeros((in_pad, out_pad), jnp.float32).at[:in_f, :out_f].set(w)
            bp = jnp.zeros((1, out_pad), jnp.float32).at[0, :out_f].set(b)
            padded.append((wp.astype(weight_dtype), bp))   # bias stays f32
            prev_out = out_pad
        return padded

    return {
        "mlp_left": pad_stack(params["mlp_left"]),
        "mlp_right": pad_stack(params["mlp_right"]),
        "gamma_w": params["gamma_w"].astype(jnp.float32),
        "gamma_b": params["gamma_b"].astype(jnp.float32),
    }


# ----------------------------------------------------------------------------
# Pure-JAX reference (same math) for correctness checks
# ----------------------------------------------------------------------------
def dssm_reference(params, q, p, ns):
    def mlp(x, layers):
        for w, b in layers:
            x = jnp.tanh(x @ w + b)
        return x

    B, N, F = ns.shape
    out_q = mlp(q, params["mlp_left"])
    docs = jnp.concatenate([p[:, None, :], ns], axis=1).reshape(B * (N + 1), F)
    out_docs = mlp(docs, params["mlp_right"]).reshape(B, N + 1, -1)

    dots = jnp.sum(out_q[:, None, :] * out_docs, axis=-1)
    qn = jnp.linalg.norm(out_q, axis=-1, keepdims=True)
    dn = jnp.linalg.norm(out_docs, axis=-1)
    cos = dots / jnp.maximum(qn * dn, 1e-8)
    scores = cos * params["gamma_w"][0, 0] + params["gamma_b"][0, 0]
    return jax.nn.softmax(scores, axis=1)[:, 0]


if __name__ == "__main__":
    # Small, forward-consistent shapes.
    B, NUM_NEG, IN_FEATURES = 2, 4, 64
    MLP_LAYERS, MLP_UNITS, MLP_FAN_OUT = 3, 32, 16

    root = jax.random.PRNGKey(0)
    k_params, kq, kp, kn, kq2, kp2, kn2 = jax.random.split(root, 7)

    params = init_dssm_params(k_params, IN_FEATURES, MLP_LAYERS, MLP_UNITS,
                              MLP_FAN_OUT)
    padded = pad_dssm_params(params)

    q = jax.random.uniform(kq, (B, IN_FEATURES), jnp.float32)
    p = jax.random.uniform(kp, (B, IN_FEATURES), jnp.float32)
    ns = jax.random.uniform(kn, (B, NUM_NEG, IN_FEATURES), jnp.float32)

    out = jax.block_until_ready(dssm_forward(padded, q, p, ns))
    ref = dssm_reference(params, q, p, ns)
    assert out.shape == (B,)
    assert jnp.allclose(out, ref, rtol=2e-3, atol=2e-3), (out, ref)

    # Multi-tile check: batch split across 2 "parallel" grid steps.
    B2 = 16
    q2 = jax.random.uniform(kq2, (B2, IN_FEATURES), jnp.float32)
    p2 = jax.random.uniform(kp2, (B2, IN_FEATURES), jnp.float32)
    ns2 = jax.random.uniform(kn2, (B2, NUM_NEG, IN_FEATURES), jnp.float32)
    out2 = jax.block_until_ready(dssm_forward(padded, q2, p2, ns2, block_b=8))
    ref2 = dssm_reference(params, q2, p2, ns2)
    assert out2.shape == (B2,)
    assert jnp.allclose(out2, ref2, rtol=2e-3, atol=2e-3), (out2, ref2)

    # bf16 MXU-input path: weights pre-cast ONCE; f32 accumulation, f32 tanh,
    # f32 cosine/softmax. (bf16_act=True is the v6e/v7x EUP option.)
    padded_bf16 = pad_dssm_params(params, weight_dtype=jnp.bfloat16)
    out3 = jax.block_until_ready(dssm_forward(padded_bf16, q2, p2, ns2,
                                              block_b=8))
    assert jnp.allclose(out3, ref2, rtol=5e-2, atol=5e-2), (out3, ref2)

    print("KERNEL_OK")
</pallas_src>

<mosaic_0001>
module attributes {stable_mosaic.version = 11 : i64} {
  func.func @kernel(%arg0: i32, %arg1: memref<8x64xf32, #tpu.memory_space<vmem>>, %arg2: memref<5x8x64xf32, #tpu.memory_space<vmem>>, %arg3: memref<64x128xf32, #tpu.memory_space<vmem>>, %arg4: memref<1x128xf32, #tpu.memory_space<vmem>>, %arg5: memref<128x128xf32, #tpu.memory_space<vmem>>, %arg6: memref<1x128xf32, #tpu.memory_space<vmem>>, %arg7: memref<128x128xf32, #tpu.memory_space<vmem>>, %arg8: memref<1x128xf32, #tpu.memory_space<vmem>>, %arg9: memref<128x128xf32, #tpu.memory_space<vmem>>, %arg10: memref<1x128xf32, #tpu.memory_space<vmem>>, %arg11: memref<64x128xf32, #tpu.memory_space<vmem>>, %arg12: memref<1x128xf32, #tpu.memory_space<vmem>>, %arg13: memref<128x128xf32, #tpu.memory_space<vmem>>, %arg14: memref<1x128xf32, #tpu.memory_space<vmem>>, %arg15: memref<128x128xf32, #tpu.memory_space<vmem>>, %arg16: memref<1x128xf32, #tpu.memory_space<vmem>>, %arg17: memref<128x128xf32, #tpu.memory_space<vmem>>, %arg18: memref<1x128xf32, #tpu.memory_space<vmem>>, %arg19: memref<1x1xf32, #tpu.memory_space<smem>>, %arg20: memref<1x1xf32, #tpu.memory_space<smem>>, %arg21: memref<8x128xf32, #tpu.memory_space<vmem>>) attributes {dimension_semantics = [#tpu.dimension_semantics<parallel>], iteration_bounds = array<i64: 1>, scalar_prefetch = 0 : i64, scratch_operands = 0 : i64, tpu.core_type = #tpu.core_type<tc>, window_params = [{transform_indices = @transform_0, window_bounds = array<i64: 8, 64>}, {transform_indices = @transform_1, window_bounds = array<i64: 5, 8, 64>}, {pipeline_mode = #tpu.pipeline_mode<synchronous>, transform_indices = @transform_2, window_bounds = array<i64: 64, 128>}, {pipeline_mode = #tpu.pipeline_mode<synchronous>, transform_indices = @transform_3, window_bounds = array<i64: 1, 128>}, {pipeline_mode = #tpu.pipeline_mode<synchronous>, transform_indices = @transform_4, window_bounds = array<i64: 128, 128>}, {pipeline_mode = #tpu.pipeline_mode<synchronous>, transform_indices = @transform_5, window_bounds = array<i64: 1, 128>}, {pipeline_mode = #tpu.pipeline_mode<synchronous>, transform_indices = @transform_6, window_bounds = array<i64: 128, 128>}, {pipeline_mode = #tpu.pipeline_mode<synchronous>, transform_indices = @transform_7, window_bounds = array<i64: 1, 128>}, {pipeline_mode = #tpu.pipeline_mode<synchronous>, transform_indices = @transform_8, window_bounds = array<i64: 128, 128>}, {pipeline_mode = #tpu.pipeline_mode<synchronous>, transform_indices = @transform_9, window_bounds = array<i64: 1, 128>}, {pipeline_mode = #tpu.pipeline_mode<synchronous>, transform_indices = @transform_10, window_bounds = array<i64: 64, 128>}, {pipeline_mode = #tpu.pipeline_mode<synchronous>, transform_indices = @transform_11, window_bounds = array<i64: 1, 128>}, {pipeline_mode = #tpu.pipeline_mode<synchronous>, transform_indices = @transform_12, window_bounds = array<i64: 128, 128>}, {pipeline_mode = #tpu.pipeline_mode<synchronous>, transform_indices = @transform_13, window_bounds = array<i64: 1, 128>}, {pipeline_mode = #tpu.pipeline_mode<synchronous>, transform_indices = @transform_14, window_bounds = array<i64: 128, 128>}, {pipeline_mode = #tpu.pipeline_mode<synchronous>, transform_indices = @transform_15, window_bounds = array<i64: 1, 128>}, {pipeline_mode = #tpu.pipeline_mode<synchronous>, transform_indices = @transform_16, window_bounds = array<i64: 128, 128>}, {pipeline_mode = #tpu.pipeline_mode<synchronous>, transform_indices = @transform_17, window_bounds = array<i64: 1, 128>}, {transform_indices = @transform_18, window_bounds = array<i64: 1, 1>}, {transform_indices = @transform_19, window_bounds = array<i64: 1, 1>}, {transform_indices = @transform_20, window_bounds = array<i64: 8, 128>}]} {
    %c0 = arith.constant 0 : index
    %c0_0 = arith.constant 0 : index
    %0 = vector.load %arg1[%c0, %c0_0] : memref<8x64xf32, #tpu.memory_space<vmem>>, vector<8x64xf32>
    %c0_1 = arith.constant 0 : index
    %c0_2 = arith.constant 0 : index
    %1 = vector.load %arg3[%c0_1, %c0_2] : memref<64x128xf32, #tpu.memory_space<vmem>>, vector<64x128xf32>
    %cst = arith.constant dense<0.000000e+00> : vector<8x128xf32>
    %2 = tpu.matmul %0, %1, %cst {dimension_numbers = #tpu.dot_dimension_numbers<[1], [0], [0], [1], [0, 0, 1, 1], [], []>} : vector<8x64xf32>, vector<64x128xf32>, vector<8x128xf32> -> vector<8x128xf32>
    %c0_3 = arith.constant 0 : index
    %c0_4 = arith.constant 0 : index
    %3 = vector.load %arg4[%c0_3, %c0_4] : memref<1x128xf32, #tpu.memory_space<vmem>>, vector<1x128xf32>
    %4 = vector.broadcast %3 : vector<1x128xf32> to vector<8x128xf32>
    %5 = arith.addf %2, %4 : vector<8x128xf32>
    %6 = math.tanh %5 : vector<8x128xf32>
    %c0_5 = arith.constant 0 : index
    %c0_6 = arith.constant 0 : index
    %7 = vector.load %arg5[%c0_5, %c0_6] : memref<128x128xf32, #tpu.memory_space<vmem>>, vector<128x128xf32>
    %cst_7 = arith.constant dense<0.000000e+00> : vector<8x128xf32>
    %8 = tpu.matmul %6, %7, %cst_7 {dimension_numbers = #tpu.dot_dimension_numbers<[1], [0], [0], [1], [0, 0, 1, 1], [], []>} : vector<8x128xf32>, vector<128x128xf32>, vector<8x128xf32> -> vector<8x128xf32>
    %c0_8 = arith.constant 0 : index
    %c0_9 = arith.constant 0 : index
    %9 = vector.load %arg6[%c0_8, %c0_9] : memref<1x128xf32, #tpu.memory_space<vmem>>, vector<1x128xf32>
    %10 = vector.broadcast %9 : vector<1x128xf32> to vector<8x128xf32>
    %11 = arith.addf %8, %10 : vector<8x128xf32>
    %12 = math.tanh %11 : vector<8x128xf32>
    %c0_10 = arith.constant 0 : index
    %c0_11 = arith.constant 0 : index
    %13 = vector.load %arg7[%c0_10, %c0_11] : memref<128x128xf32, #tpu.memory_space<vmem>>, vector<128x128xf32>
    %cst_12 = arith.constant dense<0.000000e+00> : vector<8x128xf32>
    %14 = tpu.matmul %12, %13, %cst_12 {dimension_numbers = #tpu.dot_dimension_numbers<[1], [0], [0], [1], [0, 0, 1, 1], [], []>} : vector<8x128xf32>, vector<128x128xf32>, vector<8x128xf32> -> vector<8x128xf32>
    %c0_13 = arith.constant 0 : index
    %c0_14 = arith.constant 0 : index
    %15 = vector.load %arg8[%c0_13, %c0_14] : memref<1x128xf32, #tpu.memory_space<vmem>>, vector<1x128xf32>
    %16 = vector.broadcast %15 : vector<1x128xf32> to vector<8x128xf32>
    %17 = arith.addf %14, %16 : vector<8x128xf32>
    %18 = math.tanh %17 : vector<8x128xf32>
    %c0_15 = arith.constant 0 : index
    %c0_16 = arith.constant 0 : index
    %19 = vector.load %arg9[%c0_15, %c0_16] : memref<128x128xf32, #tpu.memory_space<vmem>>, vector<128x128xf32>
    %cst_17 = arith.constant dense<0.000000e+00> : vector<8x128xf32>
    %20 = tpu.matmul %18, %19, %cst_17 {dimension_numbers = #tpu.dot_dimension_numbers<[1], [0], [0], [1], [0, 0, 1, 1], [], []>} : vector<8x128xf32>, vector<128x128xf32>, vector<8x128xf32> -> vector<8x128xf32>
    %c0_18 = arith.constant 0 : index
    %c0_19 = arith.constant 0 : index
    %21 = vector.load %arg10[%c0_18, %c0_19] : memref<1x128xf32, #tpu.memory_space<vmem>>, vector<1x128xf32>
    %22 = vector.broadcast %21 : vector<1x128xf32> to vector<8x128xf32>
    %23 = arith.addf %20, %22 : vector<8x128xf32>
    %24 = math.tanh %23 : vector<8x128xf32>
    %25 = arith.mulf %24, %24 : vector<8x128xf32>
    %cst_20 = arith.constant dense<0.000000e+00> : vector<8xf32>
    %26 = vector.multi_reduction <add>, %25, %cst_20 [1] : vector<8x128xf32> to vector<8xf32>
    %27 = vector.shape_cast %26 : vector<8xf32> to vector<8x1xf32>
    %c0_21 = arith.constant 0 : index
    %c0_22 = arith.constant 0 : index
    %c0_23 = arith.constant 0 : index
    %28 = vector.load %arg2[%c0_21, %c0_22, %c0_23] : memref<5x8x64xf32, #tpu.memory_space<vmem>>, vector<5x8x64xf32>
    %29 = vector.shape_cast %28 : vector<5x8x64xf32> to vector<40x64xf32>
    %c0_24 = arith.constant 0 : index
    %c0_25 = arith.constant 0 : index
    %30 = vector.load %arg11[%c0_24, %c0_25] : memref<64x128xf32, #tpu.memory_space<vmem>>, vector<64x128xf32>
    %cst_26 = arith.constant dense<0.000000e+00> : vector<40x128xf32>
    %31 = tpu.matmul %29, %30, %cst_26 {dimension_numbers = #tpu.dot_dimension_numbers<[1], [0], [0], [1], [0, 0, 1, 1], [], []>} : vector<40x64xf32>, vector<64x128xf32>, vector<40x128xf32> -> vector<40x128xf32>
    %c0_27 = arith.constant 0 : index
    %c0_28 = arith.constant 0 : index
    %32 = vector.load %arg12[%c0_27, %c0_28] : memref<1x128xf32, #tpu.memory_space<vmem>>, vector<1x128xf32>
    %33 = vector.broadcast %32 : vector<1x128xf32> to vector<40x128xf32>
    %34 = arith.addf %31, %33 : vector<40x128xf32>
    %35 = math.tanh %34 : vector<40x128xf32>
    %c0_29 = arith.constant 0 : index
    %c0_30 = arith.constant 0 : index
    %36 = vector.load %arg13[%c0_29, %c0_30] : memref<128x128xf32, #tpu.memory_space<vmem>>, vector<128x128xf32>
    %cst_31 = arith.constant dense<0.000000e+00> : vector<40x128xf32>
    %37 = tpu.matmul %35, %36, %cst_31 {dimension_numbers = #tpu.dot_dimension_numbers<[1], [0], [0], [1], [0, 0, 1, 1], [], []>} : vector<40x128xf32>, vector<128x128xf32>, vector<40x128xf32> -> vector<40x128xf32>
    %c0_32 = arith.constant 0 : index
    %c0_33 = arith.constant 0 : index
    %38 = vector.load %arg14[%c0_32, %c0_33] : memref<1x128xf32, #tpu.memory_space<vmem>>, vector<1x128xf32>
    %39 = vector.broadcast %38 : vector<1x128xf32> to vector<40x128xf32>
    %40 = arith.addf %37, %39 : vector<40x128xf32>
    %41 = math.tanh %40 : vector<40x128xf32>
    %c0_34 = arith.constant 0 : index
    %c0_35 = arith.constant 0 : index
    %42 = vector.load %arg15[%c0_34, %c0_35] : memref<128x128xf32, #tpu.memory_space<vmem>>, vector<128x128xf32>
    %cst_36 = arith.constant dense<0.000000e+00> : vector<40x128xf32>
    %43 = tpu.matmul %41, %42, %cst_36 {dimension_numbers = #tpu.dot_dimension_numbers<[1], [0], [0], [1], [0, 0, 1, 1], [], []>} : vector<40x128xf32>, vector<128x128xf32>, vector<40x128xf32> -> vector<40x128xf32>
    %c0_37 = arith.constant 0 : index
    %c0_38 = arith.constant 0 : index
    %44 = vector.load %arg16[%c0_37, %c0_38] : memref<1x128xf32, #tpu.memory_space<vmem>>, vector<1x128xf32>
    %45 = vector.broadcast %44 : vector<1x128xf32> to vector<40x128xf32>
    %46 = arith.addf %43, %45 : vector<40x128xf32>
    %47 = math.tanh %46 : vector<40x128xf32>
    %c0_39 = arith.constant 0 : index
    %c0_40 = arith.constant 0 : index
    %48 = vector.load %arg17[%c0_39, %c0_40] : memref<128x128xf32, #tpu.memory_space<vmem>>, vector<128x128xf32>
    %cst_41 = arith.constant dense<0.000000e+00> : vector<40x128xf32>
    %49 = tpu.matmul %47, %48, %cst_41 {dimension_numbers = #tpu.dot_dimension_numbers<[1], [0], [0], [1], [0, 0, 1, 1], [], []>} : vector<40x128xf32>, vector<128x128xf32>, vector<40x128xf32> -> vector<40x128xf32>
    %c0_42 = arith.constant 0 : index
    %c0_43 = arith.constant 0 : index
    %50 = vector.load %arg18[%c0_42, %c0_43] : memref<1x128xf32, #tpu.memory_space<vmem>>, vector<1x128xf32>
    %51 = vector.broadcast %50 : vector<1x128xf32> to vector<40x128xf32>
    %52 = arith.addf %49, %51 : vector<40x128xf32>
    %53 = math.tanh %52 : vector<40x128xf32>
    %c0_44 = arith.constant 0 : index
    %c0_45 = arith.constant 0 : index
    %54 = memref.load %arg19[%c0_44, %c0_45] : memref<1x1xf32, #tpu.memory_space<smem>>
    %c0_46 = arith.constant 0 : index
    %c0_47 = arith.constant 0 : index
    %55 = memref.load %arg20[%c0_46, %c0_47] : memref<1x1xf32, #tpu.memory_space<smem>>
    %56 = tpu.iota {dimensions = array<i32: 1>} : vector<8x128xi32>
    %cst_48 = arith.constant -1.000000e+30 : f32
    %57 = vector.broadcast %cst_48 : f32 to vector<8x128xf32>
    %58 = vector.extract_strided_slice %53 {offsets = [0, 0], sizes = [8, 128], strides = [1, 1]} : vector<40x128xf32> to vector<8x128xf32>
    %59 = arith.mulf %24, %58 : vector<8x128xf32>
    %cst_49 = arith.constant dense<0.000000e+00> : vector<8xf32>
    %60 = vector.multi_reduction <add>, %59, %cst_49 [1] : vector<8x128xf32> to vector<8xf32>
    %61 = vector.shape_cast %60 : vector<8xf32> to vector<8x1xf32>
    %62 = arith.mulf %58, %58 : vector<8x128xf32>
    %cst_50 = arith.constant dense<0.000000e+00> : vector<8xf32>
    %63 = vector.multi_reduction <add>, %62, %cst_50 [1] : vector<8x128xf32> to vector<8xf32>
    %64 = vector.shape_cast %63 : vector<8xf32> to vector<8x1xf32>
    %65 = arith.mulf %27, %64 : vector<8x1xf32>
    %cst_51 = arith.constant 1.000000e-16 : f32
    %66 = vector.broadcast %cst_51 : f32 to vector<8x1xf32>
    %67 = arith.maximumf %65, %66 : vector<8x1xf32>
    %68 = math.rsqrt %67 : vector<8x1xf32>
    %69 = arith.mulf %61, %68 : vector<8x1xf32>
    %c0_i32 = arith.constant 0 : i32
    %70 = vector.broadcast %c0_i32 : i32 to vector<8x128xi32>
    %71 = arith.cmpi eq, %56, %70 : vector<8x128xi32>
    %72 = vector.broadcast %54 : f32 to vector<8x1xf32>
    %73 = arith.mulf %69, %72 : vector<8x1xf32>
    %74 = vector.broadcast %55 : f32 to vector<8x1xf32>
    %75 = arith.addf %73, %74 : vector<8x1xf32>
    %76 = vector.shape_cast %75 : vector<8x1xf32> to vector<8x1xf32>
    %77 = vector.broadcast %76 : vector<8x1xf32> to vector<8x128xf32>
    %78 = arith.select %71, %77, %57 : vector<8x128xi1>, vector<8x128xf32>
    %79 = vector.extract_strided_slice %53 {offsets = [8, 0], sizes = [8, 128], strides = [1, 1]} : vector<40x128xf32> to vector<8x128xf32>
    %80 = arith.mulf %24, %79 : vector<8x128xf32>
    %cst_52 = arith.constant dense<0.000000e+00> : vector<8xf32>
    %81 = vector.multi_reduction <add>, %80, %cst_52 [1] : vector<8x128xf32> to vector<8xf32>
    %82 = vector.shape_cast %81 : vector<8xf32> to vector<8x1xf32>
    %83 = arith.mulf %79, %79 : vector<8x128xf32>
    %cst_53 = arith.constant dense<0.000000e+00> : vector<8xf32>
    %84 = vector.multi_reduction <add>, %83, %cst_53 [1] : vector<8x128xf32> to vector<8xf32>
    %85 = vector.shape_cast %84 : vector<8xf32> to vector<8x1xf32>
    %86 = arith.mulf %27, %85 : vector<8x1xf32>
    %cst_54 = arith.constant 1.000000e-16 : f32
    %87 = vector.broadcast %cst_54 : f32 to vector<8x1xf32>
    %88 = arith.maximumf %86, %87 : vector<8x1xf32>
    %89 = math.rsqrt %88 : vector<8x1xf32>
    %90 = arith.mulf %82, %89 : vector<8x1xf32>
    %c1_i32 = arith.constant 1 : i32
    %91 = vector.broadcast %c1_i32 : i32 to vector<8x128xi32>
    %92 = arith.cmpi eq, %56, %91 : vector<8x128xi32>
    %93 = vector.broadcast %54 : f32 to vector<8x1xf32>
    %94 = arith.mulf %90, %93 : vector<8x1xf32>
    %95 = vector.broadcast %55 : f32 to vector<8x1xf32>
    %96 = arith.addf %94, %95 : vector<8x1xf32>
    %97 = vector.shape_cast %96 : vector<8x1xf32> to vector<8x1xf32>
    %98 = vector.broadcast %97 : vector<8x1xf32> to vector<8x128xf32>
    %99 = arith.select %92, %98, %78 : vector<8x128xi1>, vector<8x128xf32>
    %100 = vector.extract_strided_slice %53 {offsets = [16, 0], sizes = [8, 128], strides = [1, 1]} : vector<40x128xf32> to vector<8x128xf32>
    %101 = arith.mulf %24, %100 : vector<8x128xf32>
    %cst_55 = arith.constant dense<0.000000e+00> : vector<8xf32>
    %102 = vector.multi_reduction <add>, %101, %cst_55 [1] : vector<8x128xf32> to vector<8xf32>
    %103 = vector.shape_cast %102 : vector<8xf32> to vector<8x1xf32>
    %104 = arith.mulf %100, %100 : vector<8x128xf32>
    %cst_56 = arith.constant dense<0.000000e+00> : vector<8xf32>
    %105 = vector.multi_reduction <add>, %104, %cst_56 [1] : vector<8x128xf32> to vector<8xf32>
    %106 = vector.shape_cast %105 : vector<8xf32> to vector<8x1xf32>
    %107 = arith.mulf %27, %106 : vector<8x1xf32>
    %cst_57 = arith.constant 1.000000e-16 : f32
    %108 = vector.broadcast %cst_57 : f32 to vector<8x1xf32>
    %109 = arith.maximumf %107, %108 : vector<8x1xf32>
    %110 = math.rsqrt %109 : vector<8x1xf32>
    %111 = arith.mulf %103, %110 : vector<8x1xf32>
    %c2_i32 = arith.constant 2 : i32
    %112 = vector.broadcast %c2_i32 : i32 to vector<8x128xi32>
    %113 = arith.cmpi eq, %56, %112 : vector<8x128xi32>
    %114 = vector.broadcast %54 : f32 to vector<8x1xf32>
    %115 = arith.mulf %111, %114 : vector<8x1xf32>
    %116 = vector.broadcast %55 : f32 to vector<8x1xf32>
    %117 = arith.addf %115, %116 : vector<8x1xf32>
    %118 = vector.shape_cast %117 : vector<8x1xf32> to vector<8x1xf32>
    %119 = vector.broadcast %118 : vector<8x1xf32> to vector<8x128xf32>
    %120 = arith.select %113, %119, %99 : vector<8x128xi1>, vector<8x128xf32>
    %121 = vector.extract_strided_slice %53 {offsets = [24, 0], sizes = [8, 128], strides = [1, 1]} : vector<40x128xf32> to vector<8x128xf32>
    %122 = arith.mulf %24, %121 : vector<8x128xf32>
    %cst_58 = arith.constant dense<0.000000e+00> : vector<8xf32>
    %123 = vector.multi_reduction <add>, %122, %cst_58 [1] : vector<8x128xf32> to vector<8xf32>
    %124 = vector.shape_cast %123 : vector<8xf32> to vector<8x1xf32>
    %125 = arith.mulf %121, %121 : vector<8x128xf32>
    %cst_59 = arith.constant dense<0.000000e+00> : vector<8xf32>
    %126 = vector.multi_reduction <add>, %125, %cst_59 [1] : vector<8x128xf32> to vector<8xf32>
    %127 = vector.shape_cast %126 : vector<8xf32> to vector<8x1xf32>
    %128 = arith.mulf %27, %127 : vector<8x1xf32>
    %cst_60 = arith.constant 1.000000e-16 : f32
    %129 = vector.broadcast %cst_60 : f32 to vector<8x1xf32>
    %130 = arith.maximumf %128, %129 : vector<8x1xf32>
    %131 = math.rsqrt %130 : vector<8x1xf32>
    %132 = arith.mulf %124, %131 : vector<8x1xf32>
    %c3_i32 = arith.constant 3 : i32
    %133 = vector.broadcast %c3_i32 : i32 to vector<8x128xi32>
    %134 = arith.cmpi eq, %56, %133 : vector<8x128xi32>
    %135 = vector.broadcast %54 : f32 to vector<8x1xf32>
    %136 = arith.mulf %132, %135 : vector<8x1xf32>
    %137 = vector.broadcast %55 : f32 to vector<8x1xf32>
    %138 = arith.addf %136, %137 : vector<8x1xf32>
    %139 = vector.shape_cast %138 : vector<8x1xf32> to vector<8x1xf32>
    %140 = vector.broadcast %139 : vector<8x1xf32> to vector<8x128xf32>
    %141 = arith.select %134, %140, %120 : vector<8x128xi1>, vector<8x128xf32>
    %142 = vector.extract_strided_slice %53 {offsets = [32, 0], sizes = [8, 128], strides = [1, 1]} : vector<40x128xf32> to vector<8x128xf32>
    %143 = arith.mulf %24, %142 : vector<8x128xf32>
    %cst_61 = arith.constant dense<0.000000e+00> : vector<8xf32>
    %144 = vector.multi_reduction <add>, %143, %cst_61 [1] : vector<8x128xf32> to vector<8xf32>
    %145 = vector.shape_cast %144 : vector<8xf32> to vector<8x1xf32>
    %146 = arith.mulf %142, %142 : vector<8x128xf32>
    %cst_62 = arith.constant dense<0.000000e+00> : vector<8xf32>
    %147 = vector.multi_reduction <add>, %146, %cst_62 [1] : vector<8x128xf32> to vector<8xf32>
    %148 = vector.shape_cast %147 : vector<8xf32> to vector<8x1xf32>
    %149 = arith.mulf %27, %148 : vector<8x1xf32>
    %cst_63 = arith.constant 1.000000e-16 : f32
    %150 = vector.broadcast %cst_63 : f32 to vector<8x1xf32>
    %151 = arith.maximumf %149, %150 : vector<8x1xf32>
    %152 = math.rsqrt %151 : vector<8x1xf32>
    %153 = arith.mulf %145, %152 : vector<8x1xf32>
    %c4_i32 = arith.constant 4 : i32
    %154 = vector.broadcast %c4_i32 : i32 to vector<8x128xi32>
    %155 = arith.cmpi eq, %56, %154 : vector<8x128xi32>
    %156 = vector.broadcast %54 : f32 to vector<8x1xf32>
    %157 = arith.mulf %153, %156 : vector<8x1xf32>
    %158 = vector.broadcast %55 : f32 to vector<8x1xf32>
    %159 = arith.addf %157, %158 : vector<8x1xf32>
    %160 = vector.shape_cast %159 : vector<8x1xf32> to vector<8x1xf32>
    %161 = vector.broadcast %160 : vector<8x1xf32> to vector<8x128xf32>
    %162 = arith.select %155, %161, %141 : vector<8x128xi1>, vector<8x128xf32>
    %cst_64 = arith.constant dense<0xFF800000> : vector<8xf32>
    %163 = vector.multi_reduction <maximumf>, %162, %cst_64 [1] : vector<8x128xf32> to vector<8xf32>
    %164 = vector.shape_cast %163 : vector<8xf32> to vector<8x1xf32>
    %165 = vector.broadcast %164 : vector<8x1xf32> to vector<8x128xf32>
    %166 = arith.subf %162, %165 : vector<8x128xf32>
    %167 = math.exp %166 : vector<8x128xf32>
    %cst_65 = arith.constant dense<0.000000e+00> : vector<8xf32>
    %168 = vector.multi_reduction <add>, %167, %cst_65 [1] : vector<8x128xf32> to vector<8xf32>
    %169 = vector.shape_cast %168 : vector<8xf32> to vector<8x1xf32>
    %170 = vector.broadcast %169 : vector<8x1xf32> to vector<8x128xf32>
    %171 = arith.divf %167, %170 : vector<8x128xf32>
    %c0_66 = arith.constant 0 : index
    %c0_67 = arith.constant 0 : index
    %172 = vector.load %arg21[%c0_66, %c0_67] : memref<8x128xf32, #tpu.memory_space<vmem>>, vector<8x128xf32>
    tpu.vector_store %arg21[%c0_66, %c0_67], %171 {strides = array<i32>} : memref<8x128xf32, #tpu.memory_space<vmem>>, vector<8x128xf32>,
    return
  }
  func.func @transform_0(%arg0: i32) -> (i32, i32) {
    %c0_i32 = arith.constant 0 : i32
    %c0_i32_0 = arith.constant 0 : i32
    return %arg0, %c0_i32 : i32, i32
  }
  func.func @transform_1(%arg0: i32) -> (i32, i32, i32) {
    %c0_i32 = arith.constant 0 : i32
    %c0_i32_0 = arith.constant 0 : i32
    %c0_i32_1 = arith.constant 0 : i32
    return %c0_i32, %arg0, %c0_i32_0 : i32, i32, i32
  }
  func.func @transform_2(%arg0: i32) -> (i32, i32) {
    %c0_i32 = arith.constant 0 : i32
    %c0_i32_0 = arith.constant 0 : i32
    %c0_i32_1 = arith.constant 0 : i32
    return %c0_i32, %c0_i32_0 : i32, i32
  }
  func.func @transform_3(%arg0: i32) -> (i32, i32) {
    %c0_i32 = arith.constant 0 : i32
    %c0_i32_0 = arith.constant 0 : i32
    %c0_i32_1 = arith.constant 0 : i32
    return %c0_i32, %c0_i32_0 : i32, i32
  }
  func.func @transform_4(%arg0: i32) -> (i32, i32) {
    %c0_i32 = arith.constant 0 : i32
    %c0_i32_0 = arith.constant 0 : i32
    %c0_i32_1 = arith.constant 0 : i32
    return %c0_i32, %c0_i32_0 : i32, i32
  }
  func.func @transform_5(%arg0: i32) -> (i32, i32) {
    %c0_i32 = arith.constant 0 : i32
    %c0_i32_0 = arith.constant 0 : i32
    %c0_i32_1 = arith.constant 0 : i32
    return %c0_i32, %c0_i32_0 : i32, i32
  }
  func.func @transform_6(%arg0: i32) -> (i32, i32) {
    %c0_i32 = arith.constant 0 : i32
    %c0_i32_0 = arith.constant 0 : i32
    %c0_i32_1 = arith.constant 0 : i32
    return %c0_i32, %c0_i32_0 : i32, i32
  }
  func.func @transform_7(%arg0: i32) -> (i32, i32) {
    %c0_i32 = arith.constant 0 : i32
    %c0_i32_0 = arith.constant 0 : i32
    %c0_i32_1 = arith.constant 0 : i32
    return %c0_i32, %c0_i32_0 : i32, i32
  }
  func.func @transform_8(%arg0: i32) -> (i32, i32) {
    %c0_i32 = arith.constant 0 : i32
    %c0_i32_0 = arith.constant 0 : i32
    %c0_i32_1 = arith.constant 0 : i32
    return %c0_i32, %c0_i32_0 : i32, i32
  }
  func.func @transform_9(%arg0: i32) -> (i32, i32) {
    %c0_i32 = arith.constant 0 : i32
    %c0_i32_0 = arith.constant 0 : i32
    %c0_i32_1 = arith.constant 0 : i32
    return %c0_i32, %c0_i32_0 : i32, i32
  }
  func.func @transform_10(%arg0: i32) -> (i32, i32) {
    %c0_i32 = arith.constant 0 : i32
    %c0_i32_0 = arith.constant 0 : i32
    %c0_i32_1 = arith.constant 0 : i32
    return %c0_i32, %c0_i32_0 : i32, i32
  }
  func.func @transform_11(%arg0: i32) -> (i32, i32) {
    %c0_i32 = arith.constant 0 : i32
    %c0_i32_0 = arith.constant 0 : i32
    %c0_i32_1 = arith.constant 0 : i32
    return %c0_i32, %c0_i32_0 : i32, i32
  }
  func.func @transform_12(%arg0: i32) -> (i32, i32) {
    %c0_i32 = arith.constant 0 : i32
    %c0_i32_0 = arith.constant 0 : i32
    %c0_i32_1 = arith.constant 0 : i32
    return %c0_i32, %c0_i32_0 : i32, i32
  }
  func.func @transform_13(%arg0: i32) -> (i32, i32) {
    %c0_i32 = arith.constant 0 : i32
    %c0_i32_0 = arith.constant 0 : i32
    %c0_i32_1 = arith.constant 0 : i32
    return %c0_i32, %c0_i32_0 : i32, i32
  }
  func.func @transform_14(%arg0: i32) -> (i32, i32) {
    %c0_i32 = arith.constant 0 : i32
    %c0_i32_0 = arith.constant 0 : i32
    %c0_i32_1 = arith.constant 0 : i32
    return %c0_i32, %c0_i32_0 : i32, i32
  }
  func.func @transform_15(%arg0: i32) -> (i32, i32) {
    %c0_i32 = arith.constant 0 : i32
    %c0_i32_0 = arith.constant 0 : i32
    %c0_i32_1 = arith.constant 0 : i32
    return %c0_i32, %c0_i32_0 : i32, i32
  }
  func.func @transform_16(%arg0: i32) -> (i32, i32) {
    %c0_i32 = arith.constant 0 : i32
    %c0_i32_0 = arith.constant 0 : i32
    %c0_i32_1 = arith.constant 0 : i32
    return %c0_i32, %c0_i32_0 : i32, i32
  }
  func.func @transform_17(%arg0: i32) -> (i32, i32) {
    %c0_i32 = arith.constant 0 : i32
    %c0_i32_0 = arith.constant 0 : i32
    %c0_i32_1 = arith.constant 0 : i32
    return %c0_i32, %c0_i32_0 : i32, i32
  }
  func.func @transform_18(%arg0: i32) -> (i32, i32) {
    %c0_i32 = arith.constant 0 : i32
    %c0_i32_0 = arith.constant 0 : i32
    %c0_i32_1 = arith.constant 0 : i32
    return %c0_i32, %c0_i32_0 : i32, i32
  }
  func.func @transform_19(%arg0: i32) -> (i32, i32) {
    %c0_i32 = arith.constant 0 : i32
    %c0_i32_0 = arith.constant 0 : i32
    %c0_i32_1 = arith.constant 0 : i32
    return %c0_i32, %c0_i32_0 : i32, i32
  }
  func.func @transform_20(%arg0: i32) -> (i32, i32) {
    %c0_i32 = arith.constant 0 : i32
    %c0_i32_0 = arith.constant 0 : i32
    return %arg0, %c0_i32 : i32, i32
  }
}

</mosaic_0001>

<llo_original>
// kernel: tpu_custom_call.1
$region0: #{tpu_custom_call.1}
  #allocation0 [shape = 'u32[]', space=smem, size = 0x4, offset = 0x4, fixed_abs, tag = 'smem constant byte address 0x4 - core index']
  #allocation1 [shape = 'u32[144,128]{1,0:T(1,128)}', space=vmem, size = 0x12000, scoped, tag = 'internal scratch']
  #allocation2 [shape = 'f32[1,1]{1,0:T(1,128)S(6)}', space=smem, size = 0x200, scoped, tag = 'scoped memory for tpu_custom_call.1']
  #allocation3 [shape = 'f32[1,1]{1,0:T(1,128)S(6)}', space=smem, size = 0x200, scoped, tag = 'scoped memory for tpu_custom_call.1']
  %s0 = inlined_call_operand.hbm [shape: f32[8,64], index: 0, kind: input, shape index: {}]
  %s1 = inlined_call_operand.hbm [shape: f32[5,8,64], index: 1, kind: input, shape index: {}]
  %s2 = inlined_call_operand.hbm [shape: f32[64,128], index: 2, kind: input, shape index: {}]
  %s3 = inlined_call_operand.vmem [shape: f32[1,128], index: 3, kind: input, shape index: {}]
  %s4 = inlined_call_operand.hbm [shape: f32[128,128], index: 4, kind: input, shape index: {}]
  %s5 = inlined_call_operand.vmem [shape: f32[1,128], index: 5, kind: input, shape index: {}]
  %s6 = inlined_call_operand.hbm [shape: f32[128,128], index: 6, kind: input, shape index: {}]
  %s7 = inlined_call_operand.vmem [shape: f32[1,128], index: 7, kind: input, shape index: {}]
  %s8 = inlined_call_operand.hbm [shape: f32[128,128], index: 8, kind: input, shape index: {}]
  %s9 = inlined_call_operand.vmem [shape: f32[1,128], index: 9, kind: input, shape index: {}]
  %s10 = inlined_call_operand.hbm [shape: f32[64,128], index: 10, kind: input, shape index: {}]
  %s11 = inlined_call_operand.vmem [shape: f32[1,128], index: 11, kind: input, shape index: {}]
  %s12 = inlined_call_operand.hbm [shape: f32[128,128], index: 12, kind: input, shape index: {}]
  %s13 = inlined_call_operand.vmem [shape: f32[1,128], index: 13, kind: input, shape index: {}]
  %s14 = inlined_call_operand.hbm [shape: f32[128,128], index: 14, kind: input, shape index: {}]
  %s15 = inlined_call_operand.vmem [shape: f32[1,128], index: 15, kind: input, shape index: {}]
  %s16 = inlined_call_operand.hbm [shape: f32[128,128], index: 16, kind: input, shape index: {}]
  %s17 = inlined_call_operand.vmem [shape: f32[1,128], index: 17, kind: input, shape index: {}]
  %s18 = inlined_call_operand.<no memory space> [shape: f32[1,1], index: 18, kind: input, shape index: {}]
  %s19 = inlined_call_operand.<no memory space> [shape: f32[1,1], index: 19, kind: input, shape index: {}]
  %s20 = inlined_call_operand.hbm [shape: f32[8,128], index: 20, kind: output, shape index: {}]
  %s21 = sld [smem:[#allocation0]]
  $region130: #{tpu_custom_call.1} parent=0
    _
  %s23 = ssub.s32 1, %s21
  %s24 = scalar_select 0, %s23, %s21
  %25 = sst [smem:[#allocation2]] %s18
  %26 = sst [smem:[#allocation3]] %s19
  $region1: #{tpu_custom_call.1} parent=0
    #allocation4 [shape = 'u8[4096]{0}', space=vmem, size = 0x1000, scoped, tag = 'input window, operand 0, single buffered']
    #allocation5 [shape = 's32[1]{0}', space=sflag, size = 0x4, scoped, tag = 'scoped memory for tpu_custom_call.1']
    #allocation6 [shape = 's32[1]{0}', space=sflag, size = 0x4, scoped, tag = 'scoped memory for tpu_custom_call.1']
    #allocation7 [shape = 'u8[20480]{0}', space=vmem, size = 0x5000, scoped, tag = 'input window, operand 1, single buffered']
    #allocation8 [shape = 's32[1]{0}', space=sflag, size = 0x4, scoped, tag = 'scoped memory for tpu_custom_call.1']
    #allocation9 [shape = 'u8[32768]{0}', space=vmem, size = 0x8000, scoped, tag = 'input window, operand 2, single buffered']
    #allocation10 [shape = 'u8[65536]{0}', space=vmem, size = 0x10000, scoped, tag = 'input window, operand 4, single buffered']
    #allocation11 [shape = 's32[1]{0}', space=sflag, size = 0x4, scoped, tag = 'scoped memory for tpu_custom_call.1']
    #allocation12 [shape = 'u8[65536]{0}', space=vmem, size = 0x10000, scoped, tag = 'input window, operand 6, single buffered']
    #allocation13 [shape = 'u8[65536]{0}', space=vmem, size = 0x10000, scoped, tag = 'input window, operand 8, single buffered']
    #allocation14 [shape = 's32[1]{0}', space=sflag, size = 0x4, scoped, tag = 'scoped memory for tpu_custom_call.1']
    #allocation15 [shape = 'u8[32768]{0}', space=vmem, size = 0x8000, scoped, tag = 'input window, operand 10, single buffered']
    #allocation16 [shape = 'u8[65536]{0}', space=vmem, size = 0x10000, scoped, tag = 'input window, operand 12, single buffered']
    #allocation17 [shape = 's32[1]{0}', space=sflag, size = 0x4, scoped, tag = 'scoped memory for tpu_custom_call.1']
    #allocation18 [shape = 'u8[65536]{0}', space=vmem, size = 0x10000, scoped, tag = 'input window, operand 14, single buffered']
    #allocation19 [shape = 'u8[65536]{0}', space=vmem, size = 0x10000, scoped, tag = 'input window, operand 16, single buffered']
    #allocation20 [shape = 's32[1]{0}', space=sflag, size = 0x4, scoped, tag = 'scoped memory for tpu_custom_call.1']
    #allocation21 [shape = 'u8[4096]{0}', space=vmem, size = 0x1000, scoped, tag = 'output window, operand 0, single buffered']
    %27 = vsyncpa [#allocation5], 0
    %28 = vsyncpa [#allocation8], 0
    %29 = vsyncpa [#allocation11], 0
    %30 = vsyncpa [#allocation14], 0
    %31 = vsyncpa [#allocation17], 0
    %32 = vsyncpa [#allocation20], 0
    %33 = vsyncpa [#allocation6], 0
    // Predicated region
    $region2: #{tpu_custom_call.1} parent=1 // pred_check
      _
    $region3: #{tpu_custom_call.1} parent=1 // pred_check_branch
      %35 = sbr.rel (0) target = $region5
    $region4: #{tpu_custom_call.1} parent=1 // pred_region
      %s37 = ssub.s32 128, 128
      %38 = vsyncadd [#allocation5], %s37
      %s40 = sshll.u32 [#allocation4], 4
      %s41 = int_to_ptr.vmem [resolvable:$true] %s40
      %43 = dma.hbm_to_vmem [thread:$0]  %s0, 128, %s41, [#allocation5]
    $region5: #{tpu_custom_call.1} parent=1 // pred_fallthru
      _
    // Predicated region
    $region6: #{tpu_custom_call.1} parent=1 // pred_check
      _
    $region7: #{tpu_custom_call.1} parent=1 // pred_check_branch
      %45 = sbr.rel (0) target = $region9
    $region8: #{tpu_custom_call.1} parent=1 // pred_region
      %s47 = ssub.s32 640, 640
      %48 = vsyncadd [#allocation8], %s47
      %s49 = sshll.u32 [#allocation7], 4
      %s50 = int_to_ptr.vmem [resolvable:$true] %s49
      %55 = dma.hbm_to_vmem [thread:$0]  %s1, 640, %s50, [#allocation8], 128, 128, 8
    $region9: #{tpu_custom_call.1} parent=1 // pred_fallthru
      _
    // Predicated region
    $region10: #{tpu_custom_call.1} parent=1 // pred_check
      _
    $region11: #{tpu_custom_call.1} parent=1 // pred_check_branch
      %57 = sbr.rel (0) target = $region13
    $region12: #{tpu_custom_call.1} parent=1 // pred_region
      %s59 = ssub.s32 1024, 1024
      %60 = vsyncadd [#allocation8], %s59
      %s61 = sshll.u32 [#allocation9], 4
      %s62 = int_to_ptr.vmem [resolvable:$true] %s61
      %67 = dma.hbm_to_vmem [thread:$0]  %s2, 1024, %s62, [#allocation8], 128, 128, 8
    $region13: #{tpu_custom_call.1} parent=1 // pred_fallthru
      _
    // Predicated region
    $region14: #{tpu_custom_call.1} parent=1 // pred_check
      _
    $region15: #{tpu_custom_call.1} parent=1 // pred_check_branch
      %69 = sbr.rel (0) target = $region17
    $region16: #{tpu_custom_call.1} parent=1 // pred_region
      _
    $region17: #{tpu_custom_call.1} parent=1 // pred_fallthru
      _
    // Predicated region
    $region18: #{tpu_custom_call.1} parent=1 // pred_check
      _
    $region19: #{tpu_custom_call.1} parent=1 // pred_check_branch
      %71 = sbr.rel (0) target = $region21
    $region20: #{tpu_custom_call.1} parent=1 // pred_region
      %s73 = ssub.s32 2048, 2048
      %74 = vsyncadd [#allocation11], %s73
      %s75 = sshll.u32 [#allocation10], 4
      %s76 = int_to_ptr.vmem [resolvable:$true] %s75
      %81 = dma.hbm_to_vmem [thread:$0]  %s4, 2048, %s76, [#allocation11], 128, 128, 8
    $region21: #{tpu_custom_call.1} parent=1 // pred_fallthru
      _
    // Predicated region
    $region22: #{tpu_custom_call.1} parent=1 // pred_check
      _
    $region23: #{tpu_custom_call.1} parent=1 // pred_check_branch
      %83 = sbr.rel (0) target = $region25
    $region24: #{tpu_custom_call.1} parent=1 // pred_region
      _
    $region25: #{tpu_custom_call.1} parent=1 // pred_fallthru
      _
    // Predicated region
    $region26: #{tpu_custom_call.1} parent=1 // pred_check
      _
    $region27: #{tpu_custom_call.1} parent=1 // pred_check_branch
      %85 = sbr.rel (0) target = $region29
    $region28: #{tpu_custom_call.1} parent=1 // pred_region
      %s87 = ssub.s32 2048, 2048
      %88 = vsyncadd [#allocation11], %s87
      %s89 = sshll.u32 [#allocation12], 4
      %s90 = int_to_ptr.vmem [resolvable:$true] %s89
      %95 = dma.hbm_to_vmem [thread:$0]  %s6, 2048, %s90, [#allocation11], 128, 128, 8
    $region29: #{tpu_custom_call.1} parent=1 // pred_fallthru
      _
    // Predicated region
    $region30: #{tpu_custom_call.1} parent=1 // pred_check
      _
    $region31: #{tpu_custom_call.1} parent=1 // pred_check_branch
      %97 = sbr.rel (0) target = $region33
    $region32: #{tpu_custom_call.1} parent=1 // pred_region
      _
    $region33: #{tpu_custom_call.1} parent=1 // pred_fallthru
      _
    // Predicated region
    $region34: #{tpu_custom_call.1} parent=1 // pred_check
      _
    $region35: #{tpu_custom_call.1} parent=1 // pred_check_branch
      %99 = sbr.rel (0) target = $region37
    $region36: #{tpu_custom_call.1} parent=1 // pred_region
      %s101 = ssub.s32 2048, 2048
      %102 = vsyncadd [#allocation14], %s101
      %s103 = sshll.u32 [#allocation13], 4
      %s104 = int_to_ptr.vmem [resolvable:$true] %s103
      %109 = dma.hbm_to_vmem [thread:$0]  %s8, 2048, %s104, [#allocation14], 128, 128, 8
    $region37: #{tpu_custom_call.1} parent=1 // pred_fallthru
      _
    // Predicated region
    $region38: #{tpu_custom_call.1} parent=1 // pred_check
      _
    $region39: #{tpu_custom_call.1} parent=1 // pred_check_branch
      %111 = sbr.rel (0) target = $region41
    $region40: #{tpu_custom_call.1} parent=1 // pred_region
      _
    $region41: #{tpu_custom_call.1} parent=1 // pred_fallthru
      _
    // Predicated region
    $region42: #{tpu_custom_call.1} parent=1 // pred_check
      _
    $region43: #{tpu_custom_call.1} parent=1 // pred_check_branch
      %113 = sbr.rel (0) target = $region45
    $region44: #{tpu_custom_call.1} parent=1 // pred_region
      %s115 = ssub.s32 1024, 1024
      %116 = vsyncadd [#allocation14], %s115
      %s117 = sshll.u32 [#allocation15], 4
      %s118 = int_to_ptr.vmem [resolvable:$true] %s117
      %123 = dma.hbm_to_vmem [thread:$0]  %s10, 1024, %s118, [#allocation14], 128, 128, 8
    $region45: #{tpu_custom_call.1} parent=1 // pred_fallthru
      _
    // Predicated region
    $region46: #{tpu_custom_call.1} parent=1 // pred_check
      _
    $region47: #{tpu_custom_call.1} parent=1 // pred_check_branch
      %125 = sbr.rel (0) target = $region49
    $region48: #{tpu_custom_call.1} parent=1 // pred_region
      _
    $region49: #{tpu_custom_call.1} parent=1 // pred_fallthru
      _
    // Predicated region
    $region50: #{tpu_custom_call.1} parent=1 // pred_check
      _
    $region51: #{tpu_custom_call.1} parent=1 // pred_check_branch
      %127 = sbr.rel (0) target = $region53
    $region52: #{tpu_custom_call.1} parent=1 // pred_region
      %s129 = ssub.s32 2048, 2048
      %130 = vsyncadd [#allocation17], %s129
      %s131 = sshll.u32 [#allocation16], 4
      %s132 = int_to_ptr.vmem [resolvable:$true] %s131
      %137 = dma.hbm_to_vmem [thread:$0]  %s12, 2048, %s132, [#allocation17], 128, 128, 8
    $region53: #{tpu_custom_call.1} parent=1 // pred_fallthru
      _
    // Predicated region
    $region54: #{tpu_custom_call.1} parent=1 // pred_check
      _
    $region55: #{tpu_custom_call.1} parent=1 // pred_check_branch
      %139 = sbr.rel (0) target = $region57
    $region56: #{tpu_custom_call.1} parent=1 // pred_region
      _
    $region57: #{tpu_custom_call.1} parent=1 // pred_fallthru
      _
    // Predicated region
    $region58: #{tpu_custom_call.1} parent=1 // pred_check
      _
    $region59: #{tpu_custom_call.1} parent=1 // pred_check_branch
      %141 = sbr.rel (0) target = $region61
    $region60: #{tpu_custom_call.1} parent=1 // pred_region
      %s143 = ssub.s32 2048, 2048
      %144 = vsyncadd [#allocation17], %s143
      %s145 = sshll.u32 [#allocation18], 4
      %s146 = int_to_ptr.vmem [resolvable:$true] %s145
      %151 = dma.hbm_to_vmem [thread:$0]  %s14, 2048, %s146, [#allocation17], 128, 128, 8
    $region61: #{tpu_custom_call.1} parent=1 // pred_fallthru
      _
    // Predicated region
    $region62: #{tpu_custom_call.1} parent=1 // pred_check
      _
    $region63: #{tpu_custom_call.1} parent=1 // pred_check_branch
      %153 = sbr.rel (0) target = $region65
    $region64: #{tpu_custom_call.1} parent=1 // pred_region
      _
    $region65: #{tpu_custom_call.1} parent=1 // pred_fallthru
      _
    // Predicated region
    $region66: #{tpu_custom_call.1} parent=1 // pred_check
      _
    $region67: #{tpu_custom_call.1} parent=1 // pred_check_branch
      %155 = sbr.rel (0) target = $region69
    $region68: #{tpu_custom_call.1} parent=1 // pred_region
      %s157 = ssub.s32 2048, 2048
      %158 = vsyncadd [#allocation20], %s157
      %s159 = sshll.u32 [#allocation19], 4
      %s160 = int_to_ptr.vmem [resolvable:$true] %s159
      %165 = dma.hbm_to_vmem [thread:$0]  %s16, 2048, %s160, [#allocation20], 128, 128, 8
    $region69: #{tpu_custom_call.1} parent=1 // pred_fallthru
      _
    // Predicated region
    $region70: #{tpu_custom_call.1} parent=1 // pred_check
      _
    $region71: #{tpu_custom_call.1} parent=1 // pred_check_branch
      %167 = sbr.rel (0) target = $region73
    $region72: #{tpu_custom_call.1} parent=1 // pred_region
      _
    $region73: #{tpu_custom_call.1} parent=1 // pred_fallthru
      _
    // Predicated region
    $region74: #{tpu_custom_call.1} parent=1 // pred_check
      _
    $region75: #{tpu_custom_call.1} parent=1 // pred_check_branch
      %169 = sbr.rel (0) target = $region77
    $region76: #{tpu_custom_call.1} parent=1 // pred_region
      _
    $region77: #{tpu_custom_call.1} parent=1 // pred_fallthru
      _
    // Predicated region
    $region78: #{tpu_custom_call.1} parent=1 // pred_check
      _
    $region79: #{tpu_custom_call.1} parent=1 // pred_check_branch
      %171 = sbr.rel (0) target = $region81
    $region80: #{tpu_custom_call.1} parent=1 // pred_region
      _
    $region81: #{tpu_custom_call.1} parent=1 // pred_fallthru
      _
    // Predicated region
    $region82: #{tpu_custom_call.1} parent=1 // pred_check
      _
    $region83: #{tpu_custom_call.1} parent=1 // pred_check_branch
      %173 = sbr.rel (0) target = $region85
    $region84: #{tpu_custom_call.1} parent=1 // pred_region
      %174 = dma.done [#allocation5], 128
    $region85: #{tpu_custom_call.1} parent=1 // pred_fallthru
      _
    // Predicated region
    $region86: #{tpu_custom_call.1} parent=1 // pred_check
      _
    $region87: #{tpu_custom_call.1} parent=1 // pred_check_branch
      %176 = sbr.rel (0) target = $region89
    $region88: #{tpu_custom_call.1} parent=1 // pred_region
      %177 = dma.done [#allocation8], 640
    $region89: #{tpu_custom_call.1} parent=1 // pred_fallthru
      _
    // Predicated region
    $region90: #{tpu_custom_call.1} parent=1 // pred_check
      _
    $region91: #{tpu_custom_call.1} parent=1 // pred_check_branch
      %179 = sbr.rel (0) target = $region93
    $region92: #{tpu_custom_call.1} parent=1 // pred_region
      %180 = dma.done [#allocation8], 1024
    $region93: #{tpu_custom_call.1} parent=1 // pred_fallthru
      _
    // Predicated region
    $region94: #{tpu_custom_call.1} parent=1 // pred_check
      _
    $region95: #{tpu_custom_call.1} parent=1 // pred_check_branch
      %182 = sbr.rel (0) target = $region97
    $region96: #{tpu_custom_call.1} parent=1 // pred_region
      %183 = dma.done [#allocation11], 2048
    $region97: #{tpu_custom_call.1} parent=1 // pred_fallthru
      _
    // Predicated region
    $region98: #{tpu_custom_call.1} parent=1 // pred_check
      _
    $region99: #{tpu_custom_call.1} parent=1 // pred_check_branch
      %185 = sbr.rel (0) target = $region101
    $region100: #{tpu_custom_call.1} parent=1 // pred_region
      %186 = dma.done [#allocation11], 2048
    $region101: #{tpu_custom_call.1} parent=1 // pred_fallthru
      _
    // Predicated region
    $region102: #{tpu_custom_call.1} parent=1 // pred_check
      _
    $region103: #{tpu_custom_call.1} parent=1 // pred_check_branch
      %188 = sbr.rel (0) target = $region105
    $region104: #{tpu_custom_call.1} parent=1 // pred_region
      %189 = dma.done [#allocation14], 2048
    $region105: #{tpu_custom_call.1} parent=1 // pred_fallthru
      _
    // Predicated region
    $region106: #{tpu_custom_call.1} parent=1 // pred_check
      _
    $region107: #{tpu_custom_call.1} parent=1 // pred_check_branch
      %191 = sbr.rel (0) target = $region109
    $region108: #{tpu_custom_call.1} parent=1 // pred_region
      %192 = dma.done [#allocation14], 1024
    $region109: #{tpu_custom_call.1} parent=1 // pred_fallthru
      _
    // Predicated region
    $region110: #{tpu_custom_call.1} parent=1 // pred_check
      _
    $region111: #{tpu_custom_call.1} parent=1 // pred_check_branch
      %194 = sbr.rel (0) target = $region113
    $region112: #{tpu_custom_call.1} parent=1 // pred_region
      %195 = dma.done [#allocation17], 2048
    $region113: #{tpu_custom_call.1} parent=1 // pred_fallthru
      _
    // Predicated region
    $region114: #{tpu_custom_call.1} parent=1 // pred_check
      _
    $region115: #{tpu_custom_call.1} parent=1 // pred_check_branch
      %197 = sbr.rel (0) target = $region117
    $region116: #{tpu_custom_call.1} parent=1 // pred_region
      %198 = dma.done [#allocation17], 2048
    $region117: #{tpu_custom_call.1} parent=1 // pred_fallthru
      _
    // Predicated region
    $region118: #{tpu_custom_call.1} parent=1 // pred_check
      _
    $region119: #{tpu_custom_call.1} parent=1 // pred_check_branch
      %200 = sbr.rel (0) target = $region121
    $region120: #{tpu_custom_call.1} parent=1 // pred_region
      %201 = dma.done [#allocation20], 2048
    $region121: #{tpu_custom_call.1} parent=1 // pred_fallthru
      _
    %v202 = vld [vmem:[#allocation4] sm:$0xff]
    %v203 = vld [vmem:[#allocation9] sm:$0xff]
    %v204 = vld [vmem:[#allocation9 + $0x8] sm:$0xff]
    %v205 = vld [vmem:[#allocation9 + $0x10] sm:$0xff]
    %v206 = vld [vmem:[#allocation9 + $0x18] sm:$0xff]
    %v207 = vld [vmem:[#allocation9 + $0x20] sm:$0xff]
    %v208 = vld [vmem:[#allocation9 + $0x28] sm:$0xff]
    %v209 = vld [vmem:[#allocation9 + $0x30] sm:$0xff]
    %v210 = vld [vmem:[#allocation9 + $0x38] sm:$0xff]
    %v211 = vld [vmem:[%s3] sm:$0x1]
    %v213 = vlaneseq
    %v214 = vshrl.u32 %v213, 7
    %v215 = vsub.s32 0, %v214
    %v216 = vrot.slane %v211, %v215
    %vm218 = vcmask 523264
    %v220 = vsel %vm218, %v202, 0
    %222 = vmatprep.subr.mxu0 0.0
    %223 = vmatpush1.msra.mxu0 %v203
    %224 = vmatprep.subr.mxu0 0.0
    %225 = vmatpush1.msra.mxu0 %v204
    %226 = vmatprep.subr.mxu0 0.0
    %227 = vmatpush1.msra.mxu0 %v205
    %228 = vmatprep.subr.mxu0 0.0
    %229 = vmatpush1.msra.mxu0 %v206
    %230 = vmatprep.subr.mxu0 0.0
    %231 = vmatpush1.msra.mxu0 %v207
    %232 = vmatprep.subr.mxu0 0.0
    %233 = vmatpush1.msra.mxu0 %v208
    %234 = vmatprep.subr.mxu0 0.0
    %235 = vmatpush1.msra.mxu0 %v209
    %236 = vmatprep.subr.mxu0 0.0
    %237 = vmatpush1.msra.mxu0 %v210
    %238 = vmatprep.subr.mxu0 0.0
    %239 = vmatpush1.msra.mxu0 0.0
    %240 = vmatprep.subr.mxu0 0.0
    %241 = vmatpush1.msra.mxu0 0.0
    %242 = vmatprep.subr.mxu0 0.0
    %243 = vmatpush1.msra.mxu0 0.0
    %244 = vmatprep.subr.mxu0 0.0
    %245 = vmatpush1.msra.mxu0 0.0
    %246 = vmatprep.subr.mxu0 0.0
    %247 = vmatpush1.msra.mxu0 0.0
    %248 = vmatprep.subr.mxu0 0.0
    %249 = vmatpush1.msra.mxu0 0.0
    %250 = vmatprep.subr.mxu0 0.0
    %251 = vmatpush1.msra.mxu0 0.0
    %252 = vmatprep.subr.mxu0 0.0
    %253 = vmatpush1.msra.mxu0 0.0
    %254 = vmatprep.subr.mxu0 0.0
    %255 = vmatpush1.msra.mxu0 0.0
    %256 = vmatprep.subr.mxu0 0.0
    %257 = vmatpush1.msra.mxu0 0.0
    %258 = vmatprep.subr.mxu0 0.0
    %259 = vmatpush1.msra.mxu0 0.0
    %260 = vmatprep.subr.mxu0 0.0
    %261 = vmatpush1.msra.mxu0 0.0
    %262 = vmatprep.subr.mxu0 0.0
    %263 = vmatpush1.msra.mxu0 0.0
    %264 = vmatprep.subr.mxu0 0.0
    %265 = vmatpush1.msra.mxu0 0.0
    %266 = vmatprep.subr.mxu0 0.0
    %267 = vmatpush1.msra.mxu0 0.0
    %268 = vmatprep.subr.mxu0 0.0
    %269 = vmatpush1.msra.mxu0 0.0
    %270 = vmatprep.subr.mxu0 0.0
    %271 = vmatpush1.msra.mxu0 0.0
    %272 = vmatprep.subr.mxu0 0.0
    %273 = vmatpush1.msra.mxu0 0.0
    %274 = vmatprep.subr.mxu0 0.0
    %275 = vmatpush1.msra.mxu0 0.0
    %276 = vmatprep.subr.mxu0 0.0
    %277 = vmatpush1.msra.mxu0 0.0
    %278 = vmatprep.subr.mxu0 0.0
    %279 = vmatpush1.msra.mxu0 0.0
    %280 = vmatprep.subr.mxu0 0.0
    %281 = vmatpush1.msra.mxu0 0.0
    %282 = vmatprep.subr.mxu0 0.0
    %283 = vmatpush1.msra.mxu0 0.0
    %284 = vmatprep.subr.mxu0 0.0
    %285 = vmatpush1.msra.mxu0 0.0
    %286 = vmatprep.mubr.f32.mxu0 0.0
    %287 = vmatmul.mubr.f32.gmra.mrb[0].mxu0 %v220
    %v288 = vpop.f32.mrb[0].mxu0
    %v289 = vadd.f32 %v216, %v288
    %v290 = vpop.f32.mrb[0].mxu0
    %291 = vdwg.mxu0
    %v292 = vtanh.pop %v289
    %v293 = vld [vmem:[#allocation10] sm:$0xff]
    %v294 = vld [vmem:[#allocation10 + $0x8] sm:$0xff]
    %v295 = vld [vmem:[#allocation10 + $0x10] sm:$0xff]
    %v296 = vld [vmem:[#allocation10 + $0x18] sm:$0xff]
    %v297 = vld [vmem:[#allocation10 + $0x20] sm:$0xff]
    %v298 = vld [vmem:[#allocation10 + $0x28] sm:$0xff]
    %v299 = vld [vmem:[#allocation10 + $0x30] sm:$0xff]
    %v300 = vld [vmem:[#allocation10 + $0x38] sm:$0xff]
    %v301 = vld [vmem:[#allocation10 + $0x40] sm:$0xff]
    %v302 = vld [vmem:[#allocation10 + $0x48] sm:$0xff]
    %v303 = vld [vmem:[#allocation10 + $0x50] sm:$0xff]
    %v304 = vld [vmem:[#allocation10 + $0x58] sm:$0xff]
    %v305 = vld [vmem:[#allocation10 + $0x60] sm:$0xff]
    %v306 = vld [vmem:[#allocation10 + $0x68] sm:$0xff]
    %v307 = vld [vmem:[#allocation10 + $0x70] sm:$0xff]
    %v308 = vld [vmem:[#allocation10 + $0x78] sm:$0xff]
    %v309 = vld [vmem:[%s5] sm:$0x1]
    %v311 = vlaneseq
    %v312 = vshrl.u32 %v311, 7
    %v313 = vsub.s32 0, %v312
    %v314 = vrot.slane %v309, %v313
    %316 = vmatprep.subr.mxu0 0.0
    %317 = vmatpush1.msra.mxu0 %v293
    %318 = vmatprep.subr.mxu0 0.0
    %319 = vmatpush1.msra.mxu0 %v294
    %320 = vmatprep.subr.mxu0 0.0
    %321 = vmatpush1.msra.mxu0 %v295
    %322 = vmatprep.subr.mxu0 0.0
    %323 = vmatpush1.msra.mxu0 %v296
    %324 = vmatprep.subr.mxu0 0.0
    %325 = vmatpush1.msra.mxu0 %v297
    %326 = vmatprep.subr.mxu0 0.0
    %327 = vmatpush1.msra.mxu0 %v298
    %328 = vmatprep.subr.mxu0 0.0
    %329 = vmatpush1.msra.mxu0 %v299
    %330 = vmatprep.subr.mxu0 0.0
    %331 = vmatpush1.msra.mxu0 %v300
    %332 = vmatprep.subr.mxu0 0.0
    %333 = vmatpush1.msra.mxu0 %v301
    %334 = vmatprep.subr.mxu0 0.0
    %335 = vmatpush1.msra.mxu0 %v302
    %336 = vmatprep.subr.mxu0 0.0
    %337 = vmatpush1.msra.mxu0 %v303
    %338 = vmatprep.subr.mxu0 0.0
    %339 = vmatpush1.msra.mxu0 %v304
    %340 = vmatprep.subr.mxu0 0.0
    %341 = vmatpush1.msra.mxu0 %v305
    %342 = vmatprep.subr.mxu0 0.0
    %343 = vmatpush1.msra.mxu0 %v306
    %344 = vmatprep.subr.mxu0 0.0
    %345 = vmatpush1.msra.mxu0 %v307
    %346 = vmatprep.subr.mxu0 0.0
    %347 = vmatpush1.msra.mxu0 %v308
    %348 = vmatprep.subr.mxu0 0.0
    %349 = vmatpush1.msra.mxu0 0.0
    %350 = vmatprep.subr.mxu0 0.0
    %351 = vmatpush1.msra.mxu0 0.0
    %352 = vmatprep.subr.mxu0 0.0
    %353 = vmatpush1.msra.mxu0 0.0
    %354 = vmatprep.subr.mxu0 0.0
    %355 = vmatpush1.msra.mxu0 0.0
    %356 = vmatprep.subr.mxu0 0.0
    %357 = vmatpush1.msra.mxu0 0.0
    %358 = vmatprep.subr.mxu0 0.0
    %359 = vmatpush1.msra.mxu0 0.0
    %360 = vmatprep.subr.mxu0 0.0
    %361 = vmatpush1.msra.mxu0 0.0
    %362 = vmatprep.subr.mxu0 0.0
    %363 = vmatpush1.msra.mxu0 0.0
    %364 = vmatprep.subr.mxu0 0.0
    %365 = vmatpush1.msra.mxu0 0.0
    %366 = vmatprep.subr.mxu0 0.0
    %367 = vmatpush1.msra.mxu0 0.0
    %368 = vmatprep.subr.mxu0 0.0
    %369 = vmatpush1.msra.mxu0 0.0
    %370 = vmatprep.subr.mxu0 0.0
    %371 = vmatpush1.msra.mxu0 0.0
    %372 = vmatprep.subr.mxu0 0.0
    %373 = vmatpush1.msra.mxu0 0.0
    %374 = vmatprep.subr.mxu0 0.0
    %375 = vmatpush1.msra.mxu0 0.0
    %376 = vmatprep.subr.mxu0 0.0
    %377 = vmatpush1.msra.mxu0 0.0
    %378 = vmatprep.subr.mxu0 0.0
    %379 = vmatpush1.msra.mxu0 0.0
    %380 = vmatprep.mubr.f32.mxu0 0.0
    %381 = vmatmul.mubr.f32.gmra.mrb[0].mxu0 %v292
    %v382 = vpop.f32.mrb[0].mxu0
    %v383 = vadd.f32 %v314, %v382
    %v384 = vpop.f32.mrb[0].mxu0
    %385 = vdwg.mxu0
    %v386 = vtanh.pop %v383
    %v387 = vld [vmem:[#allocation12] sm:$0xff]
    %v388 = vld [vmem:[#allocation12 + $0x8] sm:$0xff]
    %v389 = vld [vmem:[#allocation12 + $0x10] sm:$0xff]
    %v390 = vld [vmem:[#allocation12 + $0x18] sm:$0xff]
    %v391 = vld [vmem:[#allocation12 + $0x20] sm:$0xff]
    %v392 = vld [vmem:[#allocation12 + $0x28] sm:$0xff]
    %v393 = vld [vmem:[#allocation12 + $0x30] sm:$0xff]
    %v394 = vld [vmem:[#allocation12 + $0x38] sm:$0xff]
    %v395 = vld [vmem:[#allocation12 + $0x40] sm:$0xff]
    %v396 = vld [vmem:[#allocation12 + $0x48] sm:$0xff]
    %v397 = vld [vmem:[#allocation12 + $0x50] sm:$0xff]
    %v398 = vld [vmem:[#allocation12 + $0x58] sm:$0xff]
    %v399 = vld [vmem:[#allocation12 + $0x60] sm:$0xff]
    %v400 = vld [vmem:[#allocation12 + $0x68] sm:$0xff]
    %v401 = vld [vmem:[#allocation12 + $0x70] sm:$0xff]
    %v402 = vld [vmem:[#allocation12 + $0x78] sm:$0xff]
    %v403 = vld [vmem:[%s7] sm:$0x1]
    %v405 = vlaneseq
    %v406 = vshrl.u32 %v405, 7
    %v407 = vsub.s32 0, %v406
    %v408 = vrot.slane %v403, %v407
    %410 = vmatprep.subr.mxu0 0.0
    %411 = vmatpush1.msra.mxu0 %v387
    %412 = vmatprep.subr.mxu0 0.0
    %413 = vmatpush1.msra.mxu0 %v388
    %414 = vmatprep.subr.mxu0 0.0
    %415 = vmatpush1.msra.mxu0 %v389
    %416 = vmatprep.subr.mxu0 0.0
    %417 = vmatpush1.msra.mxu0 %v390
    %418 = vmatprep.subr.mxu0 0.0
    %419 = vmatpush1.msra.mxu0 %v391
    %420 = vmatprep.subr.mxu0 0.0
    %421 = vmatpush1.msra.mxu0 %v392
    %422 = vmatprep.subr.mxu0 0.0
    %423 = vmatpush1.msra.mxu0 %v393
    %424 = vmatprep.subr.mxu0 0.0
    %425 = vmatpush1.msra.mxu0 %v394
    %426 = vmatprep.subr.mxu0 0.0
    %427 = vmatpush1.msra.mxu0 %v395
    %428 = vmatprep.subr.mxu0 0.0
    %429 = vmatpush1.msra.mxu0 %v396
    %430 = vmatprep.subr.mxu0 0.0
    %431 = vmatpush1.msra.mxu0 %v397
    %432 = vmatprep.subr.mxu0 0.0
    %433 = vmatpush1.msra.mxu0 %v398
    %434 = vmatprep.subr.mxu0 0.0
    %435 = vmatpush1.msra.mxu0 %v399
    %436 = vmatprep.subr.mxu0 0.0
    %437 = vmatpush1.msra.mxu0 %v400
    %438 = vmatprep.subr.mxu0 0.0
    %439 = vmatpush1.msra.mxu0 %v401
    %440 = vmatprep.subr.mxu0 0.0
    %441 = vmatpush1.msra.mxu0 %v402
    %442 = vmatprep.subr.mxu0 0.0
    %443 = vmatpush1.msra.mxu0 0.0
    %444 = vmatprep.subr.mxu0 0.0
    %445 = vmatpush1.msra.mxu0 0.0
    %446 = vmatprep.subr.mxu0 0.0
    %447 = vmatpush1.msra.mxu0 0.0
    %448 = vmatprep.subr.mxu0 0.0
    %449 = vmatpush1.msra.mxu0 0.0
    %450 = vmatprep.subr.mxu0 0.0
    %451 = vmatpush1.msra.mxu0 0.0
    %452 = vmatprep.subr.mxu0 0.0
    %453 = vmatpush1.msra.mxu0 0.0
    %454 = vmatprep.subr.mxu0 0.0
    %455 = vmatpush1.msra.mxu0 0.0
    %456 = vmatprep.subr.mxu0 0.0
    %457 = vmatpush1.msra.mxu0 0.0
    %458 = vmatprep.subr.mxu0 0.0
    %459 = vmatpush1.msra.mxu0 0.0
    %460 = vmatprep.subr.mxu0 0.0
    %461 = vmatpush1.msra.mxu0 0.0
    %462 = vmatprep.subr.mxu0 0.0
    %463 = vmatpush1.msra.mxu0 0.0
    %464 = vmatprep.subr.mxu0 0.0
    %465 = vmatpush1.msra.mxu0 0.0
    %466 = vmatprep.subr.mxu0 0.0
    %467 = vmatpush1.msra.mxu0 0.0
    %468 = vmatprep.subr.mxu0 0.0
    %469 = vmatpush1.msra.mxu0 0.0
    %470 = vmatprep.subr.mxu0 0.0
    %471 = vmatpush1.msra.mxu0 0.0
    %472 = vmatprep.subr.mxu0 0.0
    %473 = vmatpush1.msra.mxu0 0.0
    %474 = vmatprep.mubr.f32.mxu0 0.0
    %475 = vmatmul.mubr.f32.gmra.mrb[0].mxu0 %v386
    %v476 = vpop.f32.mrb[0].mxu0
    %v477 = vadd.f32 %v408, %v476
    %v478 = vpop.f32.mrb[0].mxu0
    %479 = vdwg.mxu0
    %v480 = vtanh.pop %v477
    %v481 = vld [vmem:[#allocation13] sm:$0xff]
    %v482 = vld [vmem:[#allocation13 + $0x8] sm:$0xff]
    %v483 = vld [vmem:[#allocation13 + $0x10] sm:$0xff]
    %v484 = vld [vmem:[#allocation13 + $0x18] sm:$0xff]
    %v485 = vld [vmem:[#allocation13 + $0x20] sm:$0xff]
    %v486 = vld [vmem:[#allocation13 + $0x28] sm:$0xff]
    %v487 = vld [vmem:[#allocation13 + $0x30] sm:$0xff]
    %v488 = vld [vmem:[#allocation13 + $0x38] sm:$0xff]
    %v489 = vld [vmem:[#allocation13 + $0x40] sm:$0xff]
    %v490 = vld [vmem:[#allocation13 + $0x48] sm:$0xff]
    %v491 = vld [vmem:[#allocation13 + $0x50] sm:$0xff]
    %v492 = vld [vmem:[#allocation13 + $0x58] sm:$0xff]
    %v493 = vld [vmem:[#allocation13 + $0x60] sm:$0xff]
    %v494 = vld [vmem:[#allocation13 + $0x68] sm:$0xff]
    %v495 = vld [vmem:[#allocation13 + $0x70] sm:$0xff]
    %v496 = vld [vmem:[#allocation13 + $0x78] sm:$0xff]
    %v497 = vld [vmem:[%s9] sm:$0x1]
    %v499 = vlaneseq
    %v500 = vshrl.u32 %v499, 7
    %v501 = vsub.s32 0, %v500
    %v502 = vrot.slane %v497, %v501
    %504 = vmatprep.subr.mxu0 0.0
    %505 = vmatpush1.msra.mxu0 %v481
    %506 = vmatprep.subr.mxu0 0.0
    %507 = vmatpush1.msra.mxu0 %v482
    %508 = vmatprep.subr.mxu0 0.0
    %509 = vmatpush1.msra.mxu0 %v483
    %510 = vmatprep.subr.mxu0 0.0
    %511 = vmatpush1.msra.mxu0 %v484
    %512 = vmatprep.subr.mxu0 0.0
    %513 = vmatpush1.msra.mxu0 %v485
    %514 = vmatprep.subr.mxu0 0.0
    %515 = vmatpush1.msra.mxu0 %v486
    %516 = vmatprep.subr.mxu0 0.0
    %517 = vmatpush1.msra.mxu0 %v487
    %518 = vmatprep.subr.mxu0 0.0
    %519 = vmatpush1.msra.mxu0 %v488
    %520 = vmatprep.subr.mxu0 0.0
    %521 = vmatpush1.msra.mxu0 %v489
    %522 = vmatprep.subr.mxu0 0.0
    %523 = vmatpush1.msra.mxu0 %v490
    %524 = vmatprep.subr.mxu0 0.0
    %525 = vmatpush1.msra.mxu0 %v491
    %526 = vmatprep.subr.mxu0 0.0
    %527 = vmatpush1.msra.mxu0 %v492
    %528 = vmatprep.subr.mxu0 0.0
    %529 = vmatpush1.msra.mxu0 %v493
    %530 = vmatprep.subr.mxu0 0.0
    %531 = vmatpush1.msra.mxu0 %v494
    %532 = vmatprep.subr.mxu0 0.0
    %533 = vmatpush1.msra.mxu0 %v495
    %534 = vmatprep.subr.mxu0 0.0
    %535 = vmatpush1.msra.mxu0 %v496
    %536 = vmatprep.subr.mxu0 0.0
    %537 = vmatpush1.msra.mxu0 0.0
    %538 = vmatprep.subr.mxu0 0.0
    %539 = vmatpush1.msra.mxu0 0.0
    %540 = vmatprep.subr.mxu0 0.0
    %541 = vmatpush1.msra.mxu0 0.0
    %542 = vmatprep.subr.mxu0 0.0
    %543 = vmatpush1.msra.mxu0 0.0
    %544 = vmatprep.subr.mxu0 0.0
    %545 = vmatpush1.msra.mxu0 0.0
    %546 = vmatprep.subr.mxu0 0.0
    %547 = vmatpush1.msra.mxu0 0.0
    %548 = vmatprep.subr.mxu0 0.0
    %549 = vmatpush1.msra.mxu0 0.0
    %550 = vmatprep.subr.mxu0 0.0
    %551 = vmatpush1.msra.mxu0 0.0
    %552 = vmatprep.subr.mxu0 0.0
    %553 = vmatpush1.msra.mxu0 0.0
    %554 = vmatprep.subr.mxu0 0.0
    %555 = vmatpush1.msra.mxu0 0.0
    %556 = vmatprep.subr.mxu0 0.0
    %557 = vmatpush1.msra.mxu0 0.0
    %558 = vmatprep.subr.mxu0 0.0
    %559 = vmatpush1.msra.mxu0 0.0
    %560 = vmatprep.subr.mxu0 0.0
    %561 = vmatpush1.msra.mxu0 0.0
    %562 = vmatprep.subr.mxu0 0.0
    %563 = vmatpush1.msra.mxu0 0.0
    %564 = vmatprep.subr.mxu0 0.0
    %565 = vmatpush1.msra.mxu0 0.0
    %566 = vmatprep.subr.mxu0 0.0
    %567 = vmatpush1.msra.mxu0 0.0
    %568 = vmatprep.mubr.f32.mxu0 0.0
    %569 = vmatmul.mubr.f32.gmra.mrb[0].mxu0 %v480
    %v570 = vpop.f32.mrb[0].mxu0
    %v571 = vadd.f32 %v502, %v570
    %v572 = vpop.f32.mrb[0].mxu0
    %573 = vdwg.mxu0
    %v574 = vtanh.pop %v571
    %v575 = vmul.f32 %v574, %v574
    %576 = vadd.xlane.f32.xlu0 %v575
    %v577 = vpop.xlane.xlu0 %576
    %v578 = vld [vmem:[#allocation7] sm:$0xff]
    %v579 = vld [vmem:[#allocation7 + $0x8] sm:$0xff]
    %v580 = vld [vmem:[#allocation7 + $0x10] sm:$0xff]
    %v581 = vld [vmem:[#allocation7 + $0x18] sm:$0xff]
    %v582 = vld [vmem:[#allocation7 + $0x20] sm:$0xff]
    %v583 = vld [vmem:[#allocation15] sm:$0xff]
    %v584 = vld [vmem:[#allocation15 + $0x8] sm:$0xff]
    %v585 = vld [vmem:[#allocation15 + $0x10] sm:$0xff]
    %v586 = vld [vmem:[#allocation15 + $0x18] sm:$0xff]
    %v587 = vld [vmem:[#allocation15 + $0x20] sm:$0xff]
    %v588 = vld [vmem:[#allocation15 + $0x28] sm:$0xff]
    %v589 = vld [vmem:[#allocation15 + $0x30] sm:$0xff]
    %v590 = vld [vmem:[#allocation15 + $0x38] sm:$0xff]
    %v591 = vld [vmem:[%s11] sm:$0x1]
    %v593 = vlaneseq
    %v594 = vshrl.u32 %v593, 7
    %v595 = vsub.s32 0, %v594
    %v596 = vrot.slane %v591, %v595
    %v599 = vsel %vm218, %v578, 0
    %v602 = vsel %vm218, %v579, 0
    %v605 = vsel %vm218, %v580, 0
    %v608 = vsel %vm218, %v581, 0
    %v611 = vsel %vm218, %v582, 0
    %613 = vmatprep.subr.mxu0 0.0
    %614 = vmatpush1.msra.mxu0 %v583
    %615 = vmatprep.subr.mxu0 0.0
    %616 = vmatpush1.msra.mxu0 %v584
    %617 = vmatprep.subr.mxu0 0.0
    %618 = vmatpush1.msra.mxu0 %v585
    %619 = vmatprep.subr.mxu0 0.0
    %620 = vmatpush1.msra.mxu0 %v586
    %621 = vmatprep.subr.mxu0 0.0
    %622 = vmatpush1.msra.mxu0 %v587
    %623 = vmatprep.subr.mxu0 0.0
    %624 = vmatpush1.msra.mxu0 %v588
    %625 = vmatprep.subr.mxu0 0.0
    %626 = vmatpush1.msra.mxu0 %v589
    %627 = vmatprep.subr.mxu0 0.0
    %628 = vmatpush1.msra.mxu0 %v590
    %629 = vmatprep.subr.mxu0 0.0
    %630 = vmatpush1.msra.mxu0 0.0
    %631 = vmatprep.subr.mxu0 0.0
    %632 = vmatpush1.msra.mxu0 0.0
    %633 = vmatprep.subr.mxu0 0.0
    %634 = vmatpush1.msra.mxu0 0.0
    %635 = vmatprep.subr.mxu0 0.0
    %636 = vmatpush1.msra.mxu0 0.0
    %637 = vmatprep.subr.mxu0 0.0
    %638 = vmatpush1.msra.mxu0 0.0
    %639 = vmatprep.subr.mxu0 0.0
    %640 = vmatpush1.msra.mxu0 0.0
    %641 = vmatprep.subr.mxu0 0.0
    %642 = vmatpush1.msra.mxu0 0.0
    %643 = vmatprep.subr.mxu0 0.0
    %644 = vmatpush1.msra.mxu0 0.0
    %645 = vmatprep.subr.mxu0 0.0
    %646 = vmatpush1.msra.mxu0 0.0
    %647 = vmatprep.subr.mxu0 0.0
    %648 = vmatpush1.msra.mxu0 0.0
    %649 = vmatprep.subr.mxu0 0.0
    %650 = vmatpush1.msra.mxu0 0.0
    %651 = vmatprep.subr.mxu0 0.0
    %652 = vmatpush1.msra.mxu0 0.0
    %653 = vmatprep.subr.mxu0 0.0
    %654 = vmatpush1.msra.mxu0 0.0
    %655 = vmatprep.subr.mxu0 0.0
    %656 = vmatpush1.msra.mxu0 0.0
    %657 = vmatprep.subr.mxu0 0.0
    %658 = vmatpush1.msra.mxu0 0.0
    %659 = vmatprep.subr.mxu0 0.0
    %660 = vmatpush1.msra.mxu0 0.0
    %661 = vmatprep.subr.mxu0 0.0
    %662 = vmatpush1.msra.mxu0 0.0
    %663 = vmatprep.subr.mxu0 0.0
    %664 = vmatpush1.msra.mxu0 0.0
    %665 = vmatprep.subr.mxu0 0.0
    %666 = vmatpush1.msra.mxu0 0.0
    %667 = vmatprep.subr.mxu0 0.0
    %668 = vmatpush1.msra.mxu0 0.0
    %669 = vmatprep.subr.mxu0 0.0
    %670 = vmatpush1.msra.mxu0 0.0
    %671 = vmatprep.subr.mxu0 0.0
    %672 = vmatpush1.msra.mxu0 0.0
    %673 = vmatprep.subr.mxu0 0.0
    %674 = vmatpush1.msra.mxu0 0.0
    %675 = vmatprep.subr.mxu0 0.0
    %676 = vmatpush1.msra.mxu0 0.0
    %677 = vmatprep.mubr.f32.mxu0 0.0
    %678 = vmatmul.mubr.f32.gmra.mrb[0].mxu0 %v599
    %v679 = vpop.f32.mrb[0].mxu0
    %v680 = vadd.f32 %v596, %v679
    %v681 = vpop.f32.mrb[0].mxu0
    %682 = vmatprep.mubr.f32.mxu0 0.0
    %683 = vmatmul.mubr.f32.gmra.mrb[0].mxu0 %v602
    %v684 = vpop.f32.mrb[0].mxu0
    %v685 = vadd.f32 %v596, %v684
    %v686 = vpop.f32.mrb[0].mxu0
    %687 = vmatprep.mubr.f32.mxu0 0.0
    %688 = vmatmul.mubr.f32.gmra.mrb[0].mxu0 %v605
    %v689 = vpop.f32.mrb[0].mxu0
    %v690 = vadd.f32 %v596, %v689
    %v691 = vpop.f32.mrb[0].mxu0
    %692 = vmatprep.mubr.f32.mxu0 0.0
    %693 = vmatmul.mubr.f32.gmra.mrb[0].mxu0 %v608
    %v694 = vpop.f32.mrb[0].mxu0
    %v695 = vadd.f32 %v596, %v694
    %v696 = vpop.f32.mrb[0].mxu0
    %697 = vmatprep.mubr.f32.mxu0 0.0
    %698 = vmatmul.mubr.f32.gmra.mrb[0].mxu0 %v611
    %v699 = vpop.f32.mrb[0].mxu0
    %v700 = vadd.f32 %v596, %v699
    %v701 = vpop.f32.mrb[0].mxu0
    %702 = vdwg.mxu0
    %v703 = vtanh.pop %v680
    %v704 = vtanh.pop %v685
    %v705 = vtanh.pop %v690
    %v706 = vtanh.pop %v695
    %v707 = vtanh.pop %v700
    %v708 = vld [vmem:[#allocation16] sm:$0xff]
    %v709 = vld [vmem:[#allocation16 + $0x8] sm:$0xff]
    %v710 = vld [vmem:[#allocation16 + $0x10] sm:$0xff]
    %v711 = vld [vmem:[#allocation16 + $0x18] sm:$0xff]
    %v712 = vld [vmem:[#allocation16 + $0x20] sm:$0xff]
    %v713 = vld [vmem:[#allocation16 + $0x28] sm:$0xff]
    %v714 = vld [vmem:[#allocation16 + $0x30] sm:$0xff]
    %v715 = vld [vmem:[#allocation16 + $0x38] sm:$0xff]
    %v716 = vld [vmem:[#allocation16 + $0x40] sm:$0xff]
    %v717 = vld [vmem:[#allocation16 + $0x48] sm:$0xff]
    %v718 = vld [vmem:[#allocation16 + $0x50] sm:$0xff]
    %v719 = vld [vmem:[#allocation16 + $0x58] sm:$0xff]
    %v720 = vld [vmem:[#allocation16 + $0x60] sm:$0xff]
    %v721 = vld [vmem:[#allocation16 + $0x68] sm:$0xff]
    %v722 = vld [vmem:[#allocation16 + $0x70] sm:$0xff]
    %v723 = vld [vmem:[#allocation16 + $0x78] sm:$0xff]
    %v724 = vld [vmem:[%s13] sm:$0x1]
    %v726 = vlaneseq
    %v727 = vshrl.u32 %v726, 7
    %v728 = vsub.s32 0, %v727
    %v729 = vrot.slane %v724, %v728
    %731 = vmatprep.subr.mxu0 0.0
    %732 = vmatpush1.msra.mxu0 %v708
    %733 = vmatprep.subr.mxu0 0.0
    %734 = vmatpush1.msra.mxu0 %v709
    %735 = vmatprep.subr.mxu0 0.0
    %736 = vmatpush1.msra.mxu0 %v710
    %737 = vmatprep.subr.mxu0 0.0
    %738 = vmatpush1.msra.mxu0 %v711
    %739 = vmatprep.subr.mxu0 0.0
    %740 = vmatpush1.msra.mxu0 %v712
    %741 = vmatprep.subr.mxu0 0.0
    %742 = vmatpush1.msra.mxu0 %v713
    %743 = vmatprep.subr.mxu0 0.0
    %744 = vmatpush1.msra.mxu0 %v714
    %745 = vmatprep.subr.mxu0 0.0
    %746 = vmatpush1.msra.mxu0 %v715
    %747 = vmatprep.subr.mxu0 0.0
    %748 = vmatpush1.msra.mxu0 %v716
    %749 = vmatprep.subr.mxu0 0.0
    %750 = vmatpush1.msra.mxu0 %v717
    %751 = vmatprep.subr.mxu0 0.0
    %752 = vmatpush1.msra.mxu0 %v718
    %753 = vmatprep.subr.mxu0 0.0
    %754 = vmatpush1.msra.mxu0 %v719
    %755 = vmatprep.subr.mxu0 0.0
    %756 = vmatpush1.msra.mxu0 %v720
    %757 = vmatprep.subr.mxu0 0.0
    %758 = vmatpush1.msra.mxu0 %v721
    %759 = vmatprep.subr.mxu0 0.0
    %760 = vmatpush1.msra.mxu0 %v722
    %761 = vmatprep.subr.mxu0 0.0
    %762 = vmatpush1.msra.mxu0 %v723
    %763 = vmatprep.subr.mxu0 0.0
    %764 = vmatpush1.msra.mxu0 0.0
    %765 = vmatprep.subr.mxu0 0.0
    %766 = vmatpush1.msra.mxu0 0.0
    %767 = vmatprep.subr.mxu0 0.0
    %768 = vmatpush1.msra.mxu0 0.0
    %769 = vmatprep.subr.mxu0 0.0
    %770 = vmatpush1.msra.mxu0 0.0
    %771 = vmatprep.subr.mxu0 0.0
    %772 = vmatpush1.msra.mxu0 0.0
    %773 = vmatprep.subr.mxu0 0.0
    %774 = vmatpush1.msra.mxu0 0.0
    %775 = vmatprep.subr.mxu0 0.0
    %776 = vmatpush1.msra.mxu0 0.0
    %777 = vmatprep.subr.mxu0 0.0
    %778 = vmatpush1.msra.mxu0 0.0
    %779 = vmatprep.subr.mxu0 0.0
    %780 = vmatpush1.msra.mxu0 0.0
    %781 = vmatprep.subr.mxu0 0.0
    %782 = vmatpush1.msra.mxu0 0.0
    %783 = vmatprep.subr.mxu0 0.0
    %784 = vmatpush1.msra.mxu0 0.0
    %785 = vmatprep.subr.mxu0 0.0
    %786 = vmatpush1.msra.mxu0 0.0
    %787 = vmatprep.subr.mxu0 0.0
    %788 = vmatpush1.msra.mxu0 0.0
    %789 = vmatprep.subr.mxu0 0.0
    %790 = vmatpush1.msra.mxu0 0.0
    %791 = vmatprep.subr.mxu0 0.0
    %792 = vmatpush1.msra.mxu0 0.0
    %793 = vmatprep.subr.mxu0 0.0
    %794 = vmatpush1.msra.mxu0 0.0
    %795 = vmatprep.mubr.f32.mxu0 0.0
    %796 = vmatmul.mubr.f32.gmra.mrb[0].mxu0 %v703
    %v797 = vpop.f32.mrb[0].mxu0
    %v798 = vadd.f32 %v729, %v797
    %v799 = vpop.f32.mrb[0].mxu0
    %800 = vmatprep.mubr.f32.mxu0 0.0
    %801 = vmatmul.mubr.f32.gmra.mrb[0].mxu0 %v704
    %v802 = vpop.f32.mrb[0].mxu0
    %v803 = vadd.f32 %v729, %v802
    %v804 = vpop.f32.mrb[0].mxu0
    %805 = vmatprep.mubr.f32.mxu0 0.0
    %806 = vmatmul.mubr.f32.gmra.mrb[0].mxu0 %v705
    %v807 = vpop.f32.mrb[0].mxu0
    %v808 = vadd.f32 %v729, %v807
    %v809 = vpop.f32.mrb[0].mxu0
    %810 = vmatprep.mubr.f32.mxu0 0.0
    %811 = vmatmul.mubr.f32.gmra.mrb[0].mxu0 %v706
    %v812 = vpop.f32.mrb[0].mxu0
    %v813 = vadd.f32 %v729, %v812
    %v814 = vpop.f32.mrb[0].mxu0
    %815 = vmatprep.mubr.f32.mxu0 0.0
    %816 = vmatmul.mubr.f32.gmra.mrb[0].mxu0 %v707
    %v817 = vpop.f32.mrb[0].mxu0
    %v818 = vadd.f32 %v729, %v817
    %v819 = vpop.f32.mrb[0].mxu0
    %820 = vdwg.mxu0
    %v821 = vtanh.pop %v798
    %v822 = vtanh.pop %v803
    %v823 = vtanh.pop %v808
    %v824 = vtanh.pop %v813
    %v825 = vtanh.pop %v818
    %v826 = vld [vmem:[#allocation18] sm:$0xff]
    %v827 = vld [vmem:[#allocation18 + $0x8] sm:$0xff]
    %v828 = vld [vmem:[#allocation18 + $0x10] sm:$0xff]
    %v829 = vld [vmem:[#allocation18 + $0x18] sm:$0xff]
    %v830 = vld [vmem:[#allocation18 + $0x20] sm:$0xff]
    %v831 = vld [vmem:[#allocation18 + $0x28] sm:$0xff]
    %v832 = vld [vmem:[#allocation18 + $0x30] sm:$0xff]
    %v833 = vld [vmem:[#allocation18 + $0x38] sm:$0xff]
    %v834 = vld [vmem:[#allocation18 + $0x40] sm:$0xff]
    %v835 = vld [vmem:[#allocation18 + $0x48] sm:$0xff]
    %v836 = vld [vmem:[#allocation18 + $0x50] sm:$0xff]
    %v837 = vld [vmem:[#allocation18 + $0x58] sm:$0xff]
    %v838 = vld [vmem:[#allocation18 + $0x60] sm:$0xff]
    %v839 = vld [vmem:[#allocation18 + $0x68] sm:$0xff]
    %v840 = vld [vmem:[#allocation18 + $0x70] sm:$0xff]
    %v841 = vld [vmem:[#allocation18 + $0x78] sm:$0xff]
    %v842 = vld [vmem:[%s15] sm:$0x1]
    %v844 = vlaneseq
    %v845 = vshrl.u32 %v844, 7
    %v846 = vsub.s32 0, %v845
    %v847 = vrot.slane %v842, %v846
    %849 = vmatprep.subr.mxu0 0.0
    %850 = vmatpush1.msra.mxu0 %v826
    %851 = vmatprep.subr.mxu0 0.0
    %852 = vmatpush1.msra.mxu0 %v827
    %853 = vmatprep.subr.mxu0 0.0
    %854 = vmatpush1.msra.mxu0 %v828
    %855 = vmatprep.subr.mxu0 0.0
    %856 = vmatpush1.msra.mxu0 %v829
    %857 = vmatprep.subr.mxu0 0.0
    %858 = vmatpush1.msra.mxu0 %v830
    %859 = vmatprep.subr.mxu0 0.0
    %860 = vmatpush1.msra.mxu0 %v831
    %861 = vmatprep.subr.mxu0 0.0
    %862 = vmatpush1.msra.mxu0 %v832
    %863 = vmatprep.subr.mxu0 0.0
    %864 = vmatpush1.msra.mxu0 %v833
    %865 = vmatprep.subr.mxu0 0.0
    %866 = vmatpush1.msra.mxu0 %v834
    %867 = vmatprep.subr.mxu0 0.0
    %868 = vmatpush1.msra.mxu0 %v835
    %869 = vmatprep.subr.mxu0 0.0
    %870 = vmatpush1.msra.mxu0 %v836
    %871 = vmatprep.subr.mxu0 0.0
    %872 = vmatpush1.msra.mxu0 %v837
    %873 = vmatprep.subr.mxu0 0.0
    %874 = vmatpush1.msra.mxu0 %v838
    %875 = vmatprep.subr.mxu0 0.0
    %876 = vmatpush1.msra.mxu0 %v839
    %877 = vmatprep.subr.mxu0 0.0
    %878 = vmatpush1.msra.mxu0 %v840
    %879 = vmatprep.subr.mxu0 0.0
    %880 = vmatpush1.msra.mxu0 %v841
    %881 = vmatprep.subr.mxu0 0.0
    %882 = vmatpush1.msra.mxu0 0.0
    %883 = vmatprep.subr.mxu0 0.0
    %884 = vmatpush1.msra.mxu0 0.0
    %885 = vmatprep.subr.mxu0 0.0
    %886 = vmatpush1.msra.mxu0 0.0
    %887 = vmatprep.subr.mxu0 0.0
    %888 = vmatpush1.msra.mxu0 0.0
    %889 = vmatprep.subr.mxu0 0.0
    %890 = vmatpush1.msra.mxu0 0.0
    %891 = vmatprep.subr.mxu0 0.0
    %892 = vmatpush1.msra.mxu0 0.0
    %893 = vmatprep.subr.mxu0 0.0
    %894 = vmatpush1.msra.mxu0 0.0
    %895 = vmatprep.subr.mxu0 0.0
    %896 = vmatpush1.msra.mxu0 0.0
    %897 = vmatprep.subr.mxu0 0.0
    %898 = vmatpush1.msra.mxu0 0.0
    %899 = vmatprep.subr.mxu0 0.0
    %900 = vmatpush1.msra.mxu0 0.0
    %901 = vmatprep.subr.mxu0 0.0
    %902 = vmatpush1.msra.mxu0 0.0
    %903 = vmatprep.subr.mxu0 0.0
    %904 = vmatpush1.msra.mxu0 0.0
    %905 = vmatprep.subr.mxu0 0.0
    %906 = vmatpush1.msra.mxu0 0.0
    %907 = vmatprep.subr.mxu0 0.0
    %908 = vmatpush1.msra.mxu0 0.0
    %909 = vmatprep.subr.mxu0 0.0
    %910 = vmatpush1.msra.mxu0 0.0
    %911 = vmatprep.subr.mxu0 0.0
    %912 = vmatpush1.msra.mxu0 0.0
    %913 = vmatprep.mubr.f32.mxu0 0.0
    %914 = vmatmul.mubr.f32.gmra.mrb[0].mxu0 %v821
    %v915 = vpop.f32.mrb[0].mxu0
    %v916 = vadd.f32 %v847, %v915
    %v917 = vpop.f32.mrb[0].mxu0
    %918 = vmatprep.mubr.f32.mxu0 0.0
    %919 = vmatmul.mubr.f32.gmra.mrb[0].mxu0 %v822
    %v920 = vpop.f32.mrb[0].mxu0
    %v921 = vadd.f32 %v847, %v920
    %v922 = vpop.f32.mrb[0].mxu0
    %923 = vmatprep.mubr.f32.mxu0 0.0
    %924 = vmatmul.mubr.f32.gmra.mrb[0].mxu0 %v823
    %v925 = vpop.f32.mrb[0].mxu0
    %v926 = vadd.f32 %v847, %v925
    %v927 = vpop.f32.mrb[0].mxu0
    %928 = vmatprep.mubr.f32.mxu0 0.0
    %929 = vmatmul.mubr.f32.gmra.mrb[0].mxu0 %v824
    %v930 = vpop.f32.mrb[0].mxu0
    %v931 = vadd.f32 %v847, %v930
    %v932 = vpop.f32.mrb[0].mxu0
    %933 = vmatprep.mubr.f32.mxu0 0.0
    %934 = vmatmul.mubr.f32.gmra.mrb[0].mxu0 %v825
    %v935 = vpop.f32.mrb[0].mxu0
    %v936 = vadd.f32 %v847, %v935
    %v937 = vpop.f32.mrb[0].mxu0
    %938 = vdwg.mxu0
    %v939 = vtanh.pop %v916
    %v940 = vtanh.pop %v921
    %v941 = vtanh.pop %v926
    %v942 = vtanh.pop %v931
    %v943 = vtanh.pop %v936
    %v944 = vld [vmem:[#allocation19] sm:$0xff]
    %v945 = vld [vmem:[#allocation19 + $0x8] sm:$0xff]
    %v946 = vld [vmem:[#allocation19 + $0x10] sm:$0xff]
    %v947 = vld [vmem:[#allocation19 + $0x18] sm:$0xff]
    %v948 = vld [vmem:[#allocation19 + $0x20] sm:$0xff]
    %v949 = vld [vmem:[#allocation19 + $0x28] sm:$0xff]
    %v950 = vld [vmem:[#allocation19 + $0x30] sm:$0xff]
    %v951 = vld [vmem:[#allocation19 + $0x38] sm:$0xff]
    %v952 = vld [vmem:[#allocation19 + $0x40] sm:$0xff]
    %v953 = vld [vmem:[#allocation19 + $0x48] sm:$0xff]
    %v954 = vld [vmem:[#allocation19 + $0x50] sm:$0xff]
    %v955 = vld [vmem:[#allocation19 + $0x58] sm:$0xff]
    %v956 = vld [vmem:[#allocation19 + $0x60] sm:$0xff]
    %v957 = vld [vmem:[#allocation19 + $0x68] sm:$0xff]
    %v958 = vld [vmem:[#allocation19 + $0x70] sm:$0xff]
    %v959 = vld [vmem:[#allocation19 + $0x78] sm:$0xff]
    %v960 = vld [vmem:[%s17] sm:$0x1]
    %v962 = vlaneseq
    %v963 = vshrl.u32 %v962, 7
    %v964 = vsub.s32 0, %v963
    %v965 = vrot.slane %v960, %v964
    %967 = vmatprep.subr.mxu0 0.0
    %968 = vmatpush1.msra.mxu0 %v944
    %969 = vmatprep.subr.mxu0 0.0
    %970 = vmatpush1.msra.mxu0 %v945
    %971 = vmatprep.subr.mxu0 0.0
    %972 = vmatpush1.msra.mxu0 %v946
    %973 = vmatprep.subr.mxu0 0.0
    %974 = vmatpush1.msra.mxu0 %v947
    %975 = vmatprep.subr.mxu0 0.0
    %976 = vmatpush1.msra.mxu0 %v948
    %977 = vmatprep.subr.mxu0 0.0
    %978 = vmatpush1.msra.mxu0 %v949
    %979 = vmatprep.subr.mxu0 0.0
    %980 = vmatpush1.msra.mxu0 %v950
    %981 = vmatprep.subr.mxu0 0.0
    %982 = vmatpush1.msra.mxu0 %v951
    %983 = vmatprep.subr.mxu0 0.0
    %984 = vmatpush1.msra.mxu0 %v952
    %985 = vmatprep.subr.mxu0 0.0
    %986 = vmatpush1.msra.mxu0 %v953
    %987 = vmatprep.subr.mxu0 0.0
    %988 = vmatpush1.msra.mxu0 %v954
    %989 = vmatprep.subr.mxu0 0.0
    %990 = vmatpush1.msra.mxu0 %v955
    %991 = vmatprep.subr.mxu0 0.0
    %992 = vmatpush1.msra.mxu0 %v956
    %993 = vmatprep.subr.mxu0 0.0
    %994 = vmatpush1.msra.mxu0 %v957
    %995 = vmatprep.subr.mxu0 0.0
    %996 = vmatpush1.msra.mxu0 %v958
    %997 = vmatprep.subr.mxu0 0.0
    %998 = vmatpush1.msra.mxu0 %v959
    %999 = vmatprep.subr.mxu0 0.0
    %1000 = vmatpush1.msra.mxu0 0.0
    %1001 = vmatprep.subr.mxu0 0.0
    %1002 = vmatpush1.msra.mxu0 0.0
    %1003 = vmatprep.subr.mxu0 0.0
    %1004 = vmatpush1.msra.mxu0 0.0
    %1005 = vmatprep.subr.mxu0 0.0
    %1006 = vmatpush1.msra.mxu0 0.0
    %1007 = vmatprep.subr.mxu0 0.0
    %1008 = vmatpush1.msra.mxu0 0.0
    %1009 = vmatprep.subr.mxu0 0.0
    %1010 = vmatpush1.msra.mxu0 0.0
    %1011 = vmatprep.subr.mxu0 0.0
    %1012 = vmatpush1.msra.mxu0 0.0
    %1013 = vmatprep.subr.mxu0 0.0
    %1014 = vmatpush1.msra.mxu0 0.0
    %1015 = vmatprep.subr.mxu0 0.0
    %1016 = vmatpush1.msra.mxu0 0.0
    %1017 = vmatprep.subr.mxu0 0.0
    %1018 = vmatpush1.msra.mxu0 0.0
    %1019 = vmatprep.subr.mxu0 0.0
    %1020 = vmatpush1.msra.mxu0 0.0
    %1021 = vmatprep.subr.mxu0 0.0
    %1022 = vmatpush1.msra.mxu0 0.0
    %1023 = vmatprep.subr.mxu0 0.0
    %1024 = vmatpush1.msra.mxu0 0.0
    %1025 = vmatprep.subr.mxu0 0.0
    %1026 = vmatpush1.msra.mxu0 0.0
    %1027 = vmatprep.subr.mxu0 0.0
    %1028 = vmatpush1.msra.mxu0 0.0
    %1029 = vmatprep.subr.mxu0 0.0
    %1030 = vmatpush1.msra.mxu0 0.0
    %1031 = vmatprep.mubr.f32.mxu0 0.0
    %1032 = vmatmul.mubr.f32.gmra.mrb[0].mxu0 %v939
    %v1033 = vpop.f32.mrb[0].mxu0
    %v1034 = vadd.f32 %v965, %v1033
    %v1035 = vpop.f32.mrb[0].mxu0
    %1036 = vmatprep.mubr.f32.mxu0 0.0
    %1037 = vmatmul.mubr.f32.gmra.mrb[0].mxu0 %v940
    %v1038 = vpop.f32.mrb[0].mxu0
    %v1039 = vadd.f32 %v965, %v1038
    %v1040 = vpop.f32.mrb[0].mxu0
    %1041 = vmatprep.mubr.f32.mxu0 0.0
    %1042 = vmatmul.mubr.f32.gmra.mrb[0].mxu0 %v941
    %v1043 = vpop.f32.mrb[0].mxu0
    %v1044 = vadd.f32 %v965, %v1043
    %v1045 = vpop.f32.mrb[0].mxu0
    %1046 = vmatprep.mubr.f32.mxu0 0.0
    %1047 = vmatmul.mubr.f32.gmra.mrb[0].mxu0 %v942
    %v1048 = vpop.f32.mrb[0].mxu0
    %v1049 = vadd.f32 %v965, %v1048
    %v1050 = vpop.f32.mrb[0].mxu0
    %1051 = vmatprep.mubr.f32.mxu0 0.0
    %1052 = vmatmul.mubr.f32.gmra.mrb[0].mxu0 %v943
    %v1053 = vpop.f32.mrb[0].mxu0
    %v1054 = vadd.f32 %v965, %v1053
    %v1055 = vpop.f32.mrb[0].mxu0
    %1056 = vdwg.mxu0
    %v1057 = vtanh.pop %v1034
    %v1058 = vtanh.pop %v1039
    %v1059 = vtanh.pop %v1044
    %v1060 = vtanh.pop %v1049
    %v1061 = vtanh.pop %v1054
    %s1062 = sld [smem:[#allocation2]]
    %s1063 = sld [smem:[#allocation3]]
    %v1064 = vlaneseq
    %v1065 = vand.u32 %v1064, 127
    %v1066 = vmul.f32 %v574, %v1057
    %1067 = vadd.xlane.f32.xlu0 %v1066
    %v1068 = vpop.xlane.xlu0 %1067
    %v1069 = vmul.f32 %v1057, %v1057
    %1070 = vadd.xlane.f32.xlu0 %v1069
    %v1071 = vpop.xlane.xlu0 %1070
    %v1072 = vmul.f32 %v577, %v1071
    %v1073 = vmax.f32 %v1072, 1e-16
    %v1074 = vrsqrt.pop %v1073
    %v1075 = vmul.f32 %v1068, %v1074
    %vm1076 = vcmp.eq.s32.totalorder %v1065, 0
    %v1077 = vstv %s1062
    %v1078 = vmul.f32 %v1075, %v1077
    %v1079 = vstv %s1063
    %v1080 = vadd.f32 %v1078, %v1079
    %v1081 = vsel %vm1076, %v1080, -1e+30
    %v1082 = vmul.f32 %v574, %v1058
    %1083 = vadd.xlane.f32.xlu0 %v1082
    %v1084 = vpop.xlane.xlu0 %1083
    %v1085 = vmul.f32 %v1058, %v1058
    %1086 = vadd.xlane.f32.xlu0 %v1085
    %v1087 = vpop.xlane.xlu0 %1086
    %v1088 = vmul.f32 %v577, %v1087
    %v1089 = vmax.f32 %v1088, 1e-16
    %v1090 = vrsqrt.pop %v1089
    %v1091 = vmul.f32 %v1084, %v1090
    %vm1092 = vcmp.eq.s32.totalorder %v1065, 1
    %v1093 = vmul.f32 %v1091, %v1077
    %v1094 = vadd.f32 %v1093, %v1079
    %v1095 = vsel %vm1092, %v1094, %v1081
    %v1096 = vmul.f32 %v574, %v1059
    %1097 = vadd.xlane.f32.xlu0 %v1096
    %v1098 = vpop.xlane.xlu0 %1097
    %v1099 = vmul.f32 %v1059, %v1059
    %1100 = vadd.xlane.f32.xlu0 %v1099
    %v1101 = vpop.xlane.xlu0 %1100
    %v1102 = vmul.f32 %v577, %v1101
    %v1103 = vmax.f32 %v1102, 1e-16
    %v1104 = vrsqrt.pop %v1103
    %v1105 = vmul.f32 %v1098, %v1104
    %vm1106 = vcmp.eq.s32.totalorder %v1065, 2
    %v1107 = vmul.f32 %v1105, %v1077
    %v1108 = vadd.f32 %v1107, %v1079
    %v1109 = vsel %vm1106, %v1108, %v1095
    %v1110 = vmul.f32 %v574, %v1060
    %1111 = vadd.xlane.f32.xlu0 %v1110
    %v1112 = vpop.xlane.xlu0 %1111
    %v1113 = vmul.f32 %v1060, %v1060
    %1114 = vadd.xlane.f32.xlu0 %v1113
    %v1115 = vpop.xlane.xlu0 %1114
    %v1116 = vmul.f32 %v577, %v1115
    %v1117 = vmax.f32 %v1116, 1e-16
    %v1118 = vrsqrt.pop %v1117
    %v1119 = vmul.f32 %v1112, %v1118
    %vm1120 = vcmp.eq.s32.totalorder %v1065, 3
    %v1121 = vmul.f32 %v1119, %v1077
    %v1122 = vadd.f32 %v1121, %v1079
    %v1123 = vsel %vm1120, %v1122, %v1109
    %v1124 = vmul.f32 %v574, %v1061
    %1125 = vadd.xlane.f32.xlu0 %v1124
    %v1126 = vpop.xlane.xlu0 %1125
    %v1127 = vmul.f32 %v1061, %v1061
    %1128 = vadd.xlane.f32.xlu0 %v1127
    %v1129 = vpop.xlane.xlu0 %1128
    %v1130 = vmul.f32 %v577, %v1129
    %v1131 = vmax.f32 %v1130, 1e-16
    %v1132 = vrsqrt.pop %v1131
    %v1133 = vmul.f32 %v1126, %v1132
    %vm1134 = vcmp.eq.s32.totalorder %v1065, 4
    %v1135 = vmul.f32 %v1133, %v1077
    %v1136 = vadd.f32 %v1135, %v1079
    %v1137 = vsel %vm1134, %v1136, %v1123
    %1138 = vmax.xlane.f32.xlu0 %v1137
    %v1139 = vpop.xlane.xlu0 %1138
    %v1140 = vsub.f32 %v1137, %v1139
    %v1141 = vmul.f32 %v1140, 1.442695
    %v1142 = vpow.pop %v1141
    %1143 = vadd.xlane.f32.xlu0 %v1142
    %v1144 = vpop.xlane.xlu0 %1143
    %v1145 = vrcp.pop %v1144
    %v1146 = vmul.f32 %v1142, %v1145
    %1147 = vst [vmem:[#allocation21] sm:$0xff] %v1146
    // Predicated region
    $region122: #{tpu_custom_call.1} parent=1 // pred_check
      _
    $region123: #{tpu_custom_call.1} parent=1 // pred_check_branch
      %1149 = sbr.rel (0) target = $region125
    $region124: #{tpu_custom_call.1} parent=1 // pred_region
      %s1151 = ssub.s32 128, 128
      %1152 = vsyncadd [#allocation6], %s1151
      %s1154 = sshll.u32 [#allocation21], 4
      %s1155 = int_to_ptr.vmem [resolvable:$true] %s1154
      %1157 = dma.vmem_to_hbm [thread:$0]  %s1155, 128, %s20, [#allocation6]
    $region125: #{tpu_custom_call.1} parent=1 // pred_fallthru
      _
    // Predicated region
    $region126: #{tpu_custom_call.1} parent=1 // pred_check
      _
    $region127: #{tpu_custom_call.1} parent=1 // pred_check_branch
      %1159 = sbr.rel (0) target = $region129
    $region128: #{tpu_custom_call.1} parent=1 // pred_region
      %1160 = dma.done [#allocation6], 128
    $region129: #{tpu_custom_call.1} parent=1 // pred_fallthru
      _
    %1161 = vsyncpa [#allocation5], 1
    %1162 = vsyncpa [#allocation8], 1
    %1163 = vsyncpa [#allocation11], 1
    %1164 = vsyncpa [#allocation14], 1
    %1165 = vsyncpa [#allocation17], 1
    %1166 = vsyncpa [#allocation20], 1
    %1167 = vsyncpa [#allocation6], 1

</llo_original>
